<compile_context>
chip_gen: v7x
topology: tpu7x:2x2x1
jax: 0.10.0
libtpu: 0.0.40
codegen_flags: <defaults>
</compile_context>

<pallas_src>
import functools

import jax
import jax.numpy as jnp
from jax import lax
from jax.experimental import pallas as pl
from jax.experimental.pallas import tpu as pltpu

F32 = jnp.float32
BF16 = jnp.bfloat16
VMEM_SPEC = pl.BlockSpec(memory_space=pltpu.MemorySpace.VMEM)
# Explicit scoped-VMEM budget: v5e default is 16 MiB, v6e/v7x 32 MiB; 32 MiB is
# safe on all generations (v7x physical VMEM is 64 MiB) and plenty for the
# per-tile working sets used below.
VMEM_LIMIT = 32 * 1024 * 1024


def _pick_tile(total, target, align):
    """Largest tile <= target that divides `total` and is `align`-aligned;
    falls back to the full dimension when no such divisor exists."""
    if total <= target:
        return total
    t = (target // align) * align
    while t >= align:
        if total % t == 0:
            return t
        t -= align
    return total


# ----------------------------------------------------------------------------
# Fused per-context encoder: CNN (all kernel sizes) + GRU, grid over contexts.
# ----------------------------------------------------------------------------
def _context_encoder_kernel(*refs, kernel_sizes):
    # refs layout:
    #   x_ref                        (S*B, E) bf16, row = t*B + b (time-major)
    #   cnn_w_i (i < n_ks)           (K_i, E, Co) bf16
    #   cnn_b                        (n_ks, 1, Co) f32
    #   enc_wih  (E, 3*Hr) bf16      lane-concatenated gates [r|z|n]
    #   enc_whh  (Hr, 3*Hr) bf16
    #   enc_bih  (1, 3*Hr) f32
    #   enc_bhh  (1, 3*Hr) f32
    #   o_ref    (B, D) f32          output block
    #   gi_scr   (S*B, 3*Hr) f32     scratch (hoisted input-gate activations)
    n_ks = len(kernel_sizes)
    x_ref = refs[0]
    cnnw_refs = refs[1:1 + n_ks]
    cnnb_ref = refs[1 + n_ks]
    wih_ref = refs[2 + n_ks]
    whh_ref = refs[3 + n_ks]
    bih_ref = refs[4 + n_ks]
    bhh_ref = refs[5 + n_ks]
    o_ref = refs[6 + n_ks]
    gi_scr = refs[7 + n_ks]

    B = o_ref.shape[0]
    S = x_ref.shape[0] // B
    Co = cnnb_ref.shape[-1]
    Hr = whh_ref.shape[0]

    x_flat = x_ref[...]                                        # (S*B, E) bf16

    # ---- CNN branch: in-kernel im2col as K shifted matmuls per kernel size.
    # max_t relu(conv_t + b) == relu(max_t conv_t + b) (relu monotone, bias const).
    for i in range(n_ks):
        K = kernel_sizes[i]
        Tout = S - K + 1
        acc = jnp.dot(x_flat[0:Tout * B, :], cnnw_refs[i][0],
                      preferred_element_type=F32)              # (Tout*B, Co)
        for k in range(1, K):
            acc = acc + jnp.dot(x_flat[k * B:(k + Tout) * B, :], cnnw_refs[i][k],
                                preferred_element_type=F32)
        # Max-pool over time as a running VPU maximum over static row slices
        # (avoids per-batch concat / XLU reductions and in-kernel reshapes).
        pooled = acc[0:B, :]
        for t in range(1, Tout):
            pooled = jnp.maximum(pooled, acc[t * B:(t + 1) * B, :])
        o_ref[:, pl.ds(i * Co, Co)] = jnp.maximum(pooled + cnnb_ref[i], 0.0)

    # ---- GRU branch: input-to-hidden matmul hoisted over time (one fused matmul).
    gi_scr[...] = (jnp.dot(x_flat, wih_ref[...], preferred_element_type=F32)
                   + bih_ref[...])

    def gru_step(t, h):
        row = t * B
        gi = gi_scr[pl.ds(row, B), :]                          # (B, 3*Hr)
        gh = (jnp.dot(h.astype(BF16), whh_ref[...],
                      preferred_element_type=F32) + bhh_ref[...])
        r = jax.nn.sigmoid(gi[:, 0:Hr] + gh[:, 0:Hr])
        z = jax.nn.sigmoid(gi[:, Hr:2 * Hr] + gh[:, Hr:2 * Hr])
        n = jnp.tanh(gi[:, 2 * Hr:3 * Hr] + r * gh[:, 2 * Hr:3 * Hr])
        return (1.0 - z) * n + z * h                           # torch.nn.GRU update

    h_rnn = lax.fori_loop(0, S, gru_step, jnp.zeros((B, Hr), F32), unroll=True)
    o_ref[:, pl.ds(n_ks * Co, Hr)] = h_rnn


def encode_contexts(ctx_emb, params, kernel_sizes, Hr):
    # ctx_emb: (N, B, S, E) bf16
    N, B, S, E = ctx_emb.shape
    n_ks = len(kernel_sizes)
    Co = params['cnn_b'].shape[-1]
    D = n_ks * Co + Hr

    # Time-major flatten (row = t*B + b) done once on the XLA side; the kernel
    # derives both the conv im2col slices and the GRU steps from this one slab.
    x_flat = jnp.transpose(ctx_emb, (0, 2, 1, 3)).reshape(N, S * B, E)

    inputs = [x_flat]
    in_specs = [pl.BlockSpec((None, S * B, E), lambda n: (n, 0, 0))]

    weights = (list(params['cnn_w'])
               + [params['cnn_b'], params['enc_wih'], params['enc_whh'],
                  params['enc_bih'], params['enc_bhh']])
    for w in weights:
        inputs.append(w)
        in_specs.append(pl.BlockSpec(w.shape, lambda n, _nd=w.ndim: (0,) * _nd))

    grid_spec = pltpu.PrefetchScalarGridSpec(
        num_scalar_prefetch=0,
        grid=(N,),
        in_specs=in_specs,
        out_specs=pl.BlockSpec((None, B, D), lambda n: (n, 0, 0)),
        scratch_shapes=[pltpu.VMEM((S * B, 3 * Hr), F32)])

    return pl.pallas_call(
        functools.partial(_context_encoder_kernel,
                          kernel_sizes=tuple(kernel_sizes)),
        out_shape=jax.ShapeDtypeStruct((N, B, D), F32),
        grid_spec=grid_spec,
        compiler_params=pltpu.CompilerParams(
            dimension_semantics=("parallel",),
            vmem_limit_bytes=VMEM_LIMIT),
    )(*inputs)


# ----------------------------------------------------------------------------
# Attention (+ folded bmm with the context hiddens).
# ----------------------------------------------------------------------------
def _attention_kernel(ctx_ref, pad_ref, w_ref, u_ref, v_ref, ca_ref):
    # ctx_ref: (N*B, D) f32 (block n = ctx[n*B:(n+1)*B]); pad_ref: (B, N) f32
    # w, u: (D, D) bf16; v: (1, D) f32
    B, N = pad_ref.shape
    ctx2d = ctx_ref[...]                                        # (N*B, D) f32

    # One batched MXU push for all contexts (N*B rows) instead of N pushes.
    u_all = jnp.dot(ctx2d.astype(BF16), u_ref[...],
                    preferred_element_type=F32)                 # (N*B, D)
    hidden = ctx2d[(N - 1) * B:N * B, :].astype(BF16)           # query = last context
    attn_hidden = jnp.dot(hidden, w_ref[...], preferred_element_type=F32)  # (B, D)
    ah_rep = jnp.concatenate([attn_hidden] * N, axis=0)         # (N*B, D)
    t_all = jnp.tanh(u_all + ah_rep)                            # one batched EUP tanh

    v_row = v_ref[...]                                          # (1, D)
    cols = []
    for n in range(N):                                          # static, small N
        # (t @ v) as multiply + lane reduce instead of a width-1 MXU matmul
        cols.append(jnp.sum(t_all[n * B:(n + 1) * B, :] * v_row,
                            axis=1, keepdims=True))             # (B, 1)
    scores = jnp.concatenate(cols, axis=1)                      # (B, N)
    scores = jnp.where(pad_ref[...] > 0.5, -100000.0, scores)   # masked_fill_
    scores = scores - jnp.max(scores, axis=1, keepdims=True)
    e = jnp.exp(scores)
    aw = e * pl.reciprocal(jnp.sum(e, axis=1, keepdims=True), approx=True)

    ca = jnp.zeros(ca_ref.shape, F32)
    for n in range(N):                                          # bmm(aw, ctx_hiddens)
        ca = ca + aw[:, n:n + 1] * ctx2d[n * B:(n + 1) * B, :]
    ca_ref[...] = ca


def attention(ctx_stack, pad_matrix, w, u, v):
    N, B, D = ctx_stack.shape
    ctx2d = ctx_stack.reshape(N * B, D)        # leading-dim reshape on the XLA side
    return pl.pallas_call(
        _attention_kernel,
        out_shape=jax.ShapeDtypeStruct((B, D), F32),
        in_specs=[VMEM_SPEC] * 5,
        out_specs=VMEM_SPEC,
        compiler_params=pltpu.CompilerParams(vmem_limit_bytes=VMEM_LIMIT),
    )(ctx2d, pad_matrix, w, u, v)


# ----------------------------------------------------------------------------
# Decoder, part 1: fused GRU recurrence over all T timesteps.
# Hidden state never leaves VMEM between steps; only (T, B, D) hiddens go out.
# ----------------------------------------------------------------------------
def _decoder_gru_kernel(x_ref, ca_ref, h0_ref, wx_ref, wc_ref, whh_ref,
                        bih_ref, bhh_ref, hs_ref, gi_scr):
    # x_ref: (T*B, E) bf16 (row = t*B + b); ca/h0: (B, D) f32
    # wx: (E, 3D) wc/whh: (D, 3D) bf16 (gates lane-concatenated [r|z|n])
    # bih/bhh: (1, 3D) f32; hs_ref: (T, B, D) f32; gi_scr: (T*B, 3D) f32
    T, B, D = hs_ref.shape

    # Input-token contribution for all T steps: one fused matmul, hoisted.
    gi_scr[...] = jnp.dot(x_ref[...], wx_ref[...], preferred_element_type=F32)
    # context_attn contribution is constant across steps (bias folded in).
    gi_c = (jnp.dot(ca_ref[...].astype(BF16), wc_ref[...],
                    preferred_element_type=F32) + bih_ref[...])       # (B, 3D)

    def step(t, h):
        row = t * B
        gi = gi_scr[pl.ds(row, B), :] + gi_c
        gh = (jnp.dot(h.astype(BF16), whh_ref[...],
                      preferred_element_type=F32) + bhh_ref[...])      # one fused matmul
        r = jax.nn.sigmoid(gi[:, 0:D] + gh[:, 0:D])
        z = jax.nn.sigmoid(gi[:, D:2 * D] + gh[:, D:2 * D])
        n = jnp.tanh(gi[:, 2 * D:3 * D] + r * gh[:, 2 * D:3 * D])
        h_new = (1.0 - z) * n + z * h
        hs_ref[t] = h_new
        return h_new

    # GRU-only loop stays unrolled (per-step work is small once the projection
    # is split out into its own gridded kernel).
    lax.fori_loop(0, T, step, h0_ref[...], unroll=True)


def decode_gru(dec_emb_flat, context_attn, h0, params):
    TB, _ = dec_emb_flat.shape
    B, D = h0.shape
    T = TB // B
    return pl.pallas_call(
        _decoder_gru_kernel,
        out_shape=jax.ShapeDtypeStruct((T, B, D), F32),
        in_specs=[VMEM_SPEC] * 8,
        out_specs=VMEM_SPEC,
        scratch_shapes=[pltpu.VMEM((TB, 3 * D), F32)],
        compiler_params=pltpu.CompilerParams(vmem_limit_bytes=VMEM_LIMIT),
    )(dec_emb_flat, context_attn, h0, params['dec_wx'], params['dec_wc'],
      params['dec_whh'], params['dec_bih'], params['dec_bhh'])


# ----------------------------------------------------------------------------
# Decoder, part 2: vocab projection + log-softmax, tiled over (rows, V).
# Pass 1: online LSE across V tiles. Pass 2: logits - lse per (row, V) tile.
# ----------------------------------------------------------------------------
def _lse_kernel(hs_ref, wo_ref, bo_ref, lse_ref, m_scr, l_scr):
    j = pl.program_id(1)

    @pl.when(j == 0)
    def _():
        m_scr[...] = jnp.full_like(m_scr, -jnp.inf)
        l_scr[...] = jnp.zeros_like(l_scr)

    logits = (jnp.dot(hs_ref[...].astype(BF16), wo_ref[...],
                      preferred_element_type=F32) + bo_ref[...])
    m_new = jnp.maximum(m_scr[...], jnp.max(logits, axis=1, keepdims=True))
    l_scr[...] = (l_scr[...] * jnp.exp(m_scr[...] - m_new)
                  + jnp.sum(jnp.exp(logits - m_new), axis=1, keepdims=True))
    m_scr[...] = m_new

    @pl.when(j == pl.num_programs(1) - 1)
    def _():
        lse_ref[...] = m_scr[...] + jnp.log(l_scr[...])


def _logp_kernel(hs_ref, wo_ref, bo_ref, lse_ref, out_ref):
    logits = (jnp.dot(hs_ref[...].astype(BF16), wo_ref[...],
                      preferred_element_type=F32) + bo_ref[...])
    out_ref[...] = logits - lse_ref[...]                        # LogSoftmax(dim=1)


def project_logp(hs_flat, params):
    # hs_flat: (M, D) f32 with M = T*B rows; returns (M, V) f32 log-probs.
    M, D = hs_flat.shape
    V = params['out_w'].shape[1]
    TM = _pick_tile(M, 256, 8)
    TV = _pick_tile(V, 2048, 128)
    RT, VT = M // TM, V // TV

    lse = pl.pallas_call(
        _lse_kernel,
        out_shape=jax.ShapeDtypeStruct((M, 1), F32),
        grid_spec=pltpu.PrefetchScalarGridSpec(
            num_scalar_prefetch=0,
            grid=(RT, VT),
            in_specs=[pl.BlockSpec((TM, D), lambda i, j: (i, 0)),
                      pl.BlockSpec((D, TV), lambda i, j: (0, j)),
                      pl.BlockSpec((1, TV), lambda i, j: (0, j))],
            out_specs=pl.BlockSpec((TM, 1), lambda i, j: (i, 0)),
            scratch_shapes=[pltpu.VMEM((TM, 1), F32),
                            pltpu.VMEM((TM, 1), F32)]),
        compiler_params=pltpu.CompilerParams(
            dimension_semantics=("parallel", "arbitrary"),
            vmem_limit_bytes=VMEM_LIMIT),
    )(hs_flat, params['out_w'], params['out_b'])

    return pl.pallas_call(
        _logp_kernel,
        out_shape=jax.ShapeDtypeStruct((M, V), F32),
        grid_spec=pltpu.PrefetchScalarGridSpec(
            num_scalar_prefetch=0,
            grid=(RT, VT),
            in_specs=[pl.BlockSpec((TM, D), lambda i, j: (i, 0)),
                      pl.BlockSpec((D, TV), lambda i, j: (0, j)),
                      pl.BlockSpec((1, TV), lambda i, j: (0, j)),
                      pl.BlockSpec((TM, 1), lambda i, j: (i, 0))],
            out_specs=pl.BlockSpec((TM, TV), lambda i, j: (i, j))),
        compiler_params=pltpu.CompilerParams(
            dimension_semantics=("parallel", "parallel"),
            vmem_limit_bytes=VMEM_LIMIT),
    )(hs_flat, params['out_w'], params['out_b'], lse)


# ----------------------------------------------------------------------------
# Parameters & forward.
# ----------------------------------------------------------------------------
def _xavier(key, shape, fan_in, fan_out):
    a = (6.0 / (fan_in + fan_out)) ** 0.5
    return jax.random.uniform(key, shape, F32, -a, a)


def init_params(key, dict_size, emb_size, hidden_size, kernel_num, kernel_sizes):
    D = hidden_size
    n_ks = len(kernel_sizes)
    Hr = hidden_size - kernel_num * n_ks   # RNN-encoder hidden dim
    assert Hr > 0
    keys = iter(jax.random.split(key, 16 + n_ks))
    p = {}
    p['embedding'] = jax.random.normal(next(keys), (dict_size, emb_size), F32) * 0.1
    # conv weight (Co,1,K,E) stored as (K, E, Co): per-offset (E,Co) slices for
    # the in-kernel shifted-matmul im2col.
    p['cnn_w'] = [_xavier(next(keys), (K, emb_size, kernel_num),
                          K * emb_size, kernel_num).astype(BF16)
                  for K in kernel_sizes]
    p['cnn_b'] = jnp.zeros((n_ks, 1, kernel_num), F32)
    # GRU weights lane-concatenated gate-major [r|z|n]: one fused hh matmul/step.
    p['enc_wih'] = _xavier(next(keys), (emb_size, 3 * Hr),
                           emb_size, 3 * Hr).astype(BF16)
    p['enc_whh'] = _xavier(next(keys), (Hr, 3 * Hr), Hr, 3 * Hr).astype(BF16)
    p['enc_bih'] = jnp.zeros((1, 3 * Hr), F32)
    p['enc_bhh'] = jnp.zeros((1, 3 * Hr), F32)
    p['att_w'] = _xavier(next(keys), (D, D), D, D).astype(BF16)
    p['att_u'] = _xavier(next(keys), (D, D), D, D).astype(BF16)
    p['att_v'] = _xavier(next(keys), (1, D), D, 1)                 # row layout, f32
    # decoder GRU input weight split: [x | context_attn] columns, gates [r|z|n].
    p['dec_wx'] = _xavier(next(keys), (emb_size, 3 * D),
                          emb_size + D, 3 * D).astype(BF16)
    p['dec_wc'] = _xavier(next(keys), (D, 3 * D), emb_size + D, 3 * D).astype(BF16)
    p['dec_whh'] = _xavier(next(keys), (D, 3 * D), D, 3 * D).astype(BF16)
    p['dec_bih'] = jnp.zeros((1, 3 * D), F32)
    p['dec_bhh'] = jnp.zeros((1, 3 * D), F32)
    p['out_w'] = _xavier(next(keys), (D, dict_size), D, dict_size).astype(BF16)
    p['out_b'] = jnp.zeros((1, dict_size), F32)
    return p, Hr


def static_model_forward(params, kernel_sizes, rnn_hidden, reply_tensor_batch,
                         contexts_tensor_batch, pad_matrix_batch, ini_idx,
                         teach_forcing=True):
    B = pad_matrix_batch.shape[0]
    emb = params['embedding']

    # ---- all context encoders in one gridded kernel (CNN + zero-init GRU)
    ctx_tokens = jnp.stack(list(contexts_tensor_batch), axis=0)            # (N, B, S)
    ctx_emb = jnp.take(emb, ctx_tokens, axis=0).astype(BF16)               # (N, B, S, E)
    ctx_hidden = encode_contexts(ctx_emb, params, kernel_sizes, rnn_hidden)  # (N, B, D)

    # ---- attention (query = last context hidden) + context bmm
    context_attn = attention(ctx_hidden, pad_matrix_batch.astype(F32),
                             params['att_w'], params['att_u'], params['att_v'])

    decoder_hidden = ctx_hidden[-1]                                        # (B, D)
    T = len(reply_tensor_batch)

    if teach_forcing:
        # decoder inputs are known up front: [ini, reply_0, ..., reply_{T-2}]
        ini = jnp.full((B,), ini_idx, jnp.int32)
        dec_tokens = jnp.stack(
            [ini] + [r.astype(jnp.int32) for r in reply_tensor_batch[:-1]], axis=0)
        dec_emb = jnp.take(emb, dec_tokens, axis=0).astype(BF16)           # (T, B, E)
        dec_emb_flat = dec_emb.reshape(T * B, -1)
        hs = decode_gru(dec_emb_flat, context_attn, decoder_hidden, params)  # (T,B,D)
        logp = project_logp(hs.reshape(T * B, -1), params)
        logp = logp.reshape(T, B, -1)
        return [logp[t] for t in range(T)]

    # greedy path: next input depends on previous argmax.
    # TODO(synk): fuse this path into one grid=(T,) kernel with in-kernel argmax and
    # an in-kernel embedding-row DMA gather (memory_space=pl.ANY + make_async_copy)
    # so decoder/projection weights stay VMEM-resident instead of being re-DMA'd
    # every token.
    outs = []
    h = decoder_hidden
    decoder_input = jnp.full((B,), ini_idx, jnp.int32)
    for _ in range(T):
        x = jnp.take(emb, decoder_input, axis=0).astype(BF16)              # (B, E)
        h = decode_gru(x, context_attn, h, params)[0]                      # (B, D)
        logp = project_logp(h, params)                                     # (B, V)
        outs.append(logp)
        decoder_input = jnp.argmax(logp, axis=1).astype(jnp.int32)
    return outs


if __name__ == "__main__":
    key = jax.random.PRNGKey(0)
    DICT_SIZE, EMB, HID = 32, 16, 32
    KERNEL_NUM, KERNEL_SIZES = 8, (2, 3)
    B, N_CTX, S_CTX, T_REPLY = 2, 3, 10, 4
    INI_IDX = 1

    pkey, dkey = jax.random.split(key)
    params, rnn_hidden = init_params(pkey, DICT_SIZE, EMB, HID,
                                     KERNEL_NUM, KERNEL_SIZES)

    dkeys = jax.random.split(dkey, N_CTX + T_REPLY)
    contexts_tensor_batch = [
        jax.random.randint(dkeys[i], (B, S_CTX), 0, DICT_SIZE, jnp.int32)
        for i in range(N_CTX)]
    reply_tensor_batch = [
        jax.random.randint(dkeys[N_CTX + i], (B,), 0, DICT_SIZE, jnp.int32)
        for i in range(T_REPLY)]
    pad_matrix_batch = jnp.array([[False, True, False],
                                  [False, False, False]])

    outs = static_model_forward(params, KERNEL_SIZES, rnn_hidden,
                                reply_tensor_batch, contexts_tensor_batch,
                                pad_matrix_batch, INI_IDX, teach_forcing=True)
    jax.block_until_ready(outs)
    assert len(outs) == T_REPLY
    assert outs[0].shape == (B, DICT_SIZE) and outs[0].dtype == F32
    assert bool(jnp.isfinite(outs[0]).all())
    print("KERNEL_OK")
</pallas_src>

<mosaic_0001>
module attributes {stable_mosaic.version = 11 : i64} {
  func.func @_context_encoder_kernel(%arg0: i32, %arg1: memref<1x20x16xbf16, #tpu.memory_space<vmem>>, %arg2: memref<2x16x8xbf16, #tpu.memory_space<vmem>>, %arg3: memref<3x16x8xbf16, #tpu.memory_space<vmem>>, %arg4: memref<2x1x8xf32, #tpu.memory_space<vmem>>, %arg5: memref<16x48xbf16, #tpu.memory_space<vmem>>, %arg6: memref<16x48xbf16, #tpu.memory_space<vmem>>, %arg7: memref<1x48xf32, #tpu.memory_space<vmem>>, %arg8: memref<1x48xf32, #tpu.memory_space<vmem>>, %arg9: memref<1x2x32xf32, #tpu.memory_space<vmem>>, %arg10: memref<20x48xf32, #tpu.memory_space<vmem>>) attributes {dimension_semantics = [#tpu.dimension_semantics<parallel>], iteration_bounds = array<i64: 3>, scalar_prefetch = 0 : i64, scratch_operands = 1 : i64, tpu.core_type = #tpu.core_type<tc>, window_params = [{transform_indices = @transform_0, window_bounds = array<i64: 1, 20, 16>}, {pipeline_mode = #tpu.pipeline_mode<synchronous>, transform_indices = @transform_1, window_bounds = array<i64: 2, 16, 8>}, {pipeline_mode = #tpu.pipeline_mode<synchronous>, transform_indices = @transform_2, window_bounds = array<i64: 3, 16, 8>}, {pipeline_mode = #tpu.pipeline_mode<synchronous>, transform_indices = @transform_3, window_bounds = array<i64: 2, 1, 8>}, {pipeline_mode = #tpu.pipeline_mode<synchronous>, transform_indices = @transform_4, window_bounds = array<i64: 16, 48>}, {pipeline_mode = #tpu.pipeline_mode<synchronous>, transform_indices = @transform_5, window_bounds = array<i64: 16, 48>}, {pipeline_mode = #tpu.pipeline_mode<synchronous>, transform_indices = @transform_6, window_bounds = array<i64: 1, 48>}, {pipeline_mode = #tpu.pipeline_mode<synchronous>, transform_indices = @transform_7, window_bounds = array<i64: 1, 48>}, {transform_indices = @transform_8, window_bounds = array<i64: 1, 2, 32>}]} {
    %c0 = arith.constant 0 : index
    %c0_0 = arith.constant 0 : index
    %c0_1 = arith.constant 0 : index
    %0 = vector.load %arg1[%c0, %c0_0, %c0_1] : memref<1x20x16xbf16, #tpu.memory_space<vmem>>, vector<1x20x16xbf16>
    %1 = vector.shape_cast %0 : vector<1x20x16xbf16> to vector<20x16xbf16>
    %2 = vector.extract_strided_slice %1 {offsets = [0, 0], sizes = [18, 16], strides = [1, 1]} : vector<20x16xbf16> to vector<18x16xbf16>
    %c0_2 = arith.constant 0 : index
    %c0_3 = arith.constant 0 : index
    %c0_4 = arith.constant 0 : index
    %3 = vector.load %arg2[%c0_2, %c0_3, %c0_4] : memref<2x16x8xbf16, #tpu.memory_space<vmem>>, vector<1x16x8xbf16>
    %4 = vector.shape_cast %3 : vector<1x16x8xbf16> to vector<16x8xbf16>
    %cst = arith.constant dense<0.000000e+00> : vector<18x8xf32>
    %5 = tpu.matmul %2, %4, %cst {dimension_numbers = #tpu.dot_dimension_numbers<[1], [0], [0], [1], [0, 0, 1, 1], [], []>} : vector<18x16xbf16>, vector<16x8xbf16>, vector<18x8xf32> -> vector<18x8xf32>
    %6 = vector.extract_strided_slice %1 {offsets = [2, 0], sizes = [18, 16], strides = [1, 1]} : vector<20x16xbf16> to vector<18x16xbf16>
    %c1 = arith.constant 1 : index
    %c0_5 = arith.constant 0 : index
    %c0_6 = arith.constant 0 : index
    %7 = vector.load %arg2[%c1, %c0_5, %c0_6] : memref<2x16x8xbf16, #tpu.memory_space<vmem>>, vector<1x16x8xbf16>
    %8 = vector.shape_cast %7 : vector<1x16x8xbf16> to vector<16x8xbf16>
    %cst_7 = arith.constant dense<0.000000e+00> : vector<18x8xf32>
    %9 = tpu.matmul %6, %8, %cst_7 {dimension_numbers = #tpu.dot_dimension_numbers<[1], [0], [0], [1], [0, 0, 1, 1], [], []>} : vector<18x16xbf16>, vector<16x8xbf16>, vector<18x8xf32> -> vector<18x8xf32>
    %10 = arith.addf %5, %9 : vector<18x8xf32>
    %11 = vector.extract_strided_slice %10 {offsets = [0, 0], sizes = [2, 8], strides = [1, 1]} : vector<18x8xf32> to vector<2x8xf32>
    %12 = vector.extract_strided_slice %10 {offsets = [2, 0], sizes = [2, 8], strides = [1, 1]} : vector<18x8xf32> to vector<2x8xf32>
    %13 = arith.maximumf %11, %12 : vector<2x8xf32>
    %14 = vector.extract_strided_slice %10 {offsets = [4, 0], sizes = [2, 8], strides = [1, 1]} : vector<18x8xf32> to vector<2x8xf32>
    %15 = arith.maximumf %13, %14 : vector<2x8xf32>
    %16 = vector.extract_strided_slice %10 {offsets = [6, 0], sizes = [2, 8], strides = [1, 1]} : vector<18x8xf32> to vector<2x8xf32>
    %17 = arith.maximumf %15, %16 : vector<2x8xf32>
    %18 = vector.extract_strided_slice %10 {offsets = [8, 0], sizes = [2, 8], strides = [1, 1]} : vector<18x8xf32> to vector<2x8xf32>
    %19 = arith.maximumf %17, %18 : vector<2x8xf32>
    %20 = vector.extract_strided_slice %10 {offsets = [10, 0], sizes = [2, 8], strides = [1, 1]} : vector<18x8xf32> to vector<2x8xf32>
    %21 = arith.maximumf %19, %20 : vector<2x8xf32>
    %22 = vector.extract_strided_slice %10 {offsets = [12, 0], sizes = [2, 8], strides = [1, 1]} : vector<18x8xf32> to vector<2x8xf32>
    %23 = arith.maximumf %21, %22 : vector<2x8xf32>
    %24 = vector.extract_strided_slice %10 {offsets = [14, 0], sizes = [2, 8], strides = [1, 1]} : vector<18x8xf32> to vector<2x8xf32>
    %25 = arith.maximumf %23, %24 : vector<2x8xf32>
    %26 = vector.extract_strided_slice %10 {offsets = [16, 0], sizes = [2, 8], strides = [1, 1]} : vector<18x8xf32> to vector<2x8xf32>
    %27 = arith.maximumf %25, %26 : vector<2x8xf32>
    %c0_8 = arith.constant 0 : index
    %c0_9 = arith.constant 0 : index
    %c0_10 = arith.constant 0 : index
    %28 = vector.load %arg4[%c0_8, %c0_9, %c0_10] : memref<2x1x8xf32, #tpu.memory_space<vmem>>, vector<1x1x8xf32>
    %29 = vector.shape_cast %28 : vector<1x1x8xf32> to vector<1x8xf32>
    %30 = vector.broadcast %29 : vector<1x8xf32> to vector<2x8xf32>
    %31 = arith.addf %27, %30 : vector<2x8xf32>
    %cst_11 = arith.constant 0.000000e+00 : f32
    %32 = vector.broadcast %cst_11 : f32 to vector<2x8xf32>
    %33 = arith.maximumf %31, %32 : vector<2x8xf32>
    %c0_12 = arith.constant 0 : index
    %c0_13 = arith.constant 0 : index
    %c0_14 = arith.constant 0 : index
    %34 = vector.load %arg9[%c0_12, %c0_13, %c0_14] : memref<1x2x32xf32, #tpu.memory_space<vmem>>, vector<1x2x8xf32>
    %35 = vector.shape_cast %34 : vector<1x2x8xf32> to vector<2x8xf32>
    %36 = vector.shape_cast %33 : vector<2x8xf32> to vector<1x2x8xf32>
    tpu.vector_store %arg9[%c0_12, %c0_13, %c0_14], %36 {strides = array<i32>} : memref<1x2x32xf32, #tpu.memory_space<vmem>>, vector<1x2x8xf32>,
    %37 = vector.extract_strided_slice %1 {offsets = [0, 0], sizes = [16, 16], strides = [1, 1]} : vector<20x16xbf16> to vector<16x16xbf16>
    %c0_15 = arith.constant 0 : index
    %c0_16 = arith.constant 0 : index
    %c0_17 = arith.constant 0 : index
    %38 = vector.load %arg3[%c0_15, %c0_16, %c0_17] : memref<3x16x8xbf16, #tpu.memory_space<vmem>>, vector<1x16x8xbf16>
    %39 = vector.shape_cast %38 : vector<1x16x8xbf16> to vector<16x8xbf16>
    %cst_18 = arith.constant dense<0.000000e+00> : vector<16x8xf32>
    %40 = tpu.matmul %37, %39, %cst_18 {dimension_numbers = #tpu.dot_dimension_numbers<[1], [0], [0], [1], [0, 0, 1, 1], [], []>} : vector<16x16xbf16>, vector<16x8xbf16>, vector<16x8xf32> -> vector<16x8xf32>
    %41 = vector.extract_strided_slice %1 {offsets = [2, 0], sizes = [16, 16], strides = [1, 1]} : vector<20x16xbf16> to vector<16x16xbf16>
    %c1_19 = arith.constant 1 : index
    %c0_20 = arith.constant 0 : index
    %c0_21 = arith.constant 0 : index
    %42 = vector.load %arg3[%c1_19, %c0_20, %c0_21] : memref<3x16x8xbf16, #tpu.memory_space<vmem>>, vector<1x16x8xbf16>
    %43 = vector.shape_cast %42 : vector<1x16x8xbf16> to vector<16x8xbf16>
    %cst_22 = arith.constant dense<0.000000e+00> : vector<16x8xf32>
    %44 = tpu.matmul %41, %43, %cst_22 {dimension_numbers = #tpu.dot_dimension_numbers<[1], [0], [0], [1], [0, 0, 1, 1], [], []>} : vector<16x16xbf16>, vector<16x8xbf16>, vector<16x8xf32> -> vector<16x8xf32>
    %45 = arith.addf %40, %44 : vector<16x8xf32>
    %46 = vector.extract_strided_slice %1 {offsets = [4, 0], sizes = [16, 16], strides = [1, 1]} : vector<20x16xbf16> to vector<16x16xbf16>
    %c2 = arith.constant 2 : index
    %c0_23 = arith.constant 0 : index
    %c0_24 = arith.constant 0 : index
    %47 = vector.load %arg3[%c2, %c0_23, %c0_24] : memref<3x16x8xbf16, #tpu.memory_space<vmem>>, vector<1x16x8xbf16>
    %48 = vector.shape_cast %47 : vector<1x16x8xbf16> to vector<16x8xbf16>
    %cst_25 = arith.constant dense<0.000000e+00> : vector<16x8xf32>
    %49 = tpu.matmul %46, %48, %cst_25 {dimension_numbers = #tpu.dot_dimension_numbers<[1], [0], [0], [1], [0, 0, 1, 1], [], []>} : vector<16x16xbf16>, vector<16x8xbf16>, vector<16x8xf32> -> vector<16x8xf32>
    %50 = arith.addf %45, %49 : vector<16x8xf32>
    %51 = vector.extract_strided_slice %50 {offsets = [0, 0], sizes = [2, 8], strides = [1, 1]} : vector<16x8xf32> to vector<2x8xf32>
    %52 = vector.extract_strided_slice %50 {offsets = [2, 0], sizes = [2, 8], strides = [1, 1]} : vector<16x8xf32> to vector<2x8xf32>
    %53 = arith.maximumf %51, %52 : vector<2x8xf32>
    %54 = vector.extract_strided_slice %50 {offsets = [4, 0], sizes = [2, 8], strides = [1, 1]} : vector<16x8xf32> to vector<2x8xf32>
    %55 = arith.maximumf %53, %54 : vector<2x8xf32>
    %56 = vector.extract_strided_slice %50 {offsets = [6, 0], sizes = [2, 8], strides = [1, 1]} : vector<16x8xf32> to vector<2x8xf32>
    %57 = arith.maximumf %55, %56 : vector<2x8xf32>
    %58 = vector.extract_strided_slice %50 {offsets = [8, 0], sizes = [2, 8], strides = [1, 1]} : vector<16x8xf32> to vector<2x8xf32>
    %59 = arith.maximumf %57, %58 : vector<2x8xf32>
    %60 = vector.extract_strided_slice %50 {offsets = [10, 0], sizes = [2, 8], strides = [1, 1]} : vector<16x8xf32> to vector<2x8xf32>
    %61 = arith.maximumf %59, %60 : vector<2x8xf32>
    %62 = vector.extract_strided_slice %50 {offsets = [12, 0], sizes = [2, 8], strides = [1, 1]} : vector<16x8xf32> to vector<2x8xf32>
    %63 = arith.maximumf %61, %62 : vector<2x8xf32>
    %64 = vector.extract_strided_slice %50 {offsets = [14, 0], sizes = [2, 8], strides = [1, 1]} : vector<16x8xf32> to vector<2x8xf32>
    %65 = arith.maximumf %63, %64 : vector<2x8xf32>
    %c1_26 = arith.constant 1 : index
    %c0_27 = arith.constant 0 : index
    %c0_28 = arith.constant 0 : index
    %66 = vector.load %arg4[%c1_26, %c0_27, %c0_28] : memref<2x1x8xf32, #tpu.memory_space<vmem>>, vector<1x1x8xf32>
    %67 = vector.shape_cast %66 : vector<1x1x8xf32> to vector<1x8xf32>
    %68 = vector.broadcast %67 : vector<1x8xf32> to vector<2x8xf32>
    %69 = arith.addf %65, %68 : vector<2x8xf32>
    %cst_29 = arith.constant 0.000000e+00 : f32
    %70 = vector.broadcast %cst_29 : f32 to vector<2x8xf32>
    %71 = arith.maximumf %69, %70 : vector<2x8xf32>
    %c0_30 = arith.constant 0 : index
    %c0_31 = arith.constant 0 : index
    %c8 = arith.constant 8 : index
    %72 = vector.load %arg9[%c0_30, %c0_31, %c8] : memref<1x2x32xf32, #tpu.memory_space<vmem>>, vector<1x2x8xf32>
    %73 = vector.shape_cast %72 : vector<1x2x8xf32> to vector<2x8xf32>
    %74 = vector.shape_cast %71 : vector<2x8xf32> to vector<1x2x8xf32>
    tpu.vector_store %arg9[%c0_30, %c0_31, %c8], %74 {strides = array<i32>} : memref<1x2x32xf32, #tpu.memory_space<vmem>>, vector<1x2x8xf32>,
    %c0_32 = arith.constant 0 : index
    %c0_33 = arith.constant 0 : index
    %75 = vector.load %arg5[%c0_32, %c0_33] : memref<16x48xbf16, #tpu.memory_space<vmem>>, vector<16x48xbf16>
    %cst_34 = arith.constant dense<0.000000e+00> : vector<20x48xf32>
    %76 = tpu.matmul %1, %75, %cst_34 {dimension_numbers = #tpu.dot_dimension_numbers<[1], [0], [0], [1], [0, 0, 1, 1], [], []>} : vector<20x16xbf16>, vector<16x48xbf16>, vector<20x48xf32> -> vector<20x48xf32>
    %c0_35 = arith.constant 0 : index
    %c0_36 = arith.constant 0 : index
    %77 = vector.load %arg7[%c0_35, %c0_36] : memref<1x48xf32, #tpu.memory_space<vmem>>, vector<1x48xf32>
    %78 = vector.broadcast %77 : vector<1x48xf32> to vector<20x48xf32>
    %79 = arith.addf %76, %78 : vector<20x48xf32>
    %c0_37 = arith.constant 0 : index
    %c0_38 = arith.constant 0 : index
    %80 = vector.load %arg10[%c0_37, %c0_38] : memref<20x48xf32, #tpu.memory_space<vmem>>, vector<20x48xf32>
    tpu.vector_store %arg10[%c0_37, %c0_38], %79 {strides = array<i32>} : memref<20x48xf32, #tpu.memory_space<vmem>>, vector<20x48xf32>,
    %cst_39 = arith.constant 0.000000e+00 : f32
    %81 = vector.broadcast %cst_39 : f32 to vector<2x16xf32>
    %c0_i32 = arith.constant 0 : i32
    %c2_i32 = arith.constant 2 : i32
    %82 = arith.muli %c0_i32, %c2_i32 : i32
    %83 = arith.index_cast %82 : i32 to index
    %c0_40 = arith.constant 0 : index
    %84 = vector.load %arg10[%83, %c0_40] : memref<20x48xf32, #tpu.memory_space<vmem>>, vector<2x48xf32>
    %85 = arith.truncf %81 : vector<2x16xf32> to vector<2x16xbf16>
    %c0_41 = arith.constant 0 : index
    %c0_42 = arith.constant 0 : index
    %86 = vector.load %arg6[%c0_41, %c0_42] : memref<16x48xbf16, #tpu.memory_space<vmem>>, vector<16x48xbf16>
    %cst_43 = arith.constant dense<0.000000e+00> : vector<2x48xf32>
    %87 = tpu.matmul %85, %86, %cst_43 {dimension_numbers = #tpu.dot_dimension_numbers<[1], [0], [0], [1], [0, 0, 1, 1], [], []>} : vector<2x16xbf16>, vector<16x48xbf16>, vector<2x48xf32> -> vector<2x48xf32>
    %c0_44 = arith.constant 0 : index
    %c0_45 = arith.constant 0 : index
    %88 = vector.load %arg8[%c0_44, %c0_45] : memref<1x48xf32, #tpu.memory_space<vmem>>, vector<1x48xf32>
    %89 = vector.broadcast %88 : vector<1x48xf32> to vector<2x48xf32>
    %90 = arith.addf %87, %89 : vector<2x48xf32>
    %91 = vector.extract_strided_slice %84 {offsets = [0, 0], sizes = [2, 16], strides = [1, 1]} : vector<2x48xf32> to vector<2x16xf32>
    %92 = vector.extract_strided_slice %90 {offsets = [0, 0], sizes = [2, 16], strides = [1, 1]} : vector<2x48xf32> to vector<2x16xf32>
    %93 = arith.addf %91, %92 : vector<2x16xf32>
    %94 = arith.negf %93 : vector<2x16xf32>
    %95 = math.exp %94 : vector<2x16xf32>
    %cst_46 = arith.constant 1.000000e+00 : f32
    %96 = vector.broadcast %cst_46 : f32 to vector<2x16xf32>
    %97 = arith.addf %96, %95 : vector<2x16xf32>
    %98 = arith.divf %96, %97 : vector<2x16xf32>
    %99 = vector.extract_strided_slice %84 {offsets = [0, 16], sizes = [2, 16], strides = [1, 1]} : vector<2x48xf32> to vector<2x16xf32>
    %100 = vector.extract_strided_slice %90 {offsets = [0, 16], sizes = [2, 16], strides = [1, 1]} : vector<2x48xf32> to vector<2x16xf32>
    %101 = arith.addf %99, %100 : vector<2x16xf32>
    %102 = arith.negf %101 : vector<2x16xf32>
    %103 = math.exp %102 : vector<2x16xf32>
    %cst_47 = arith.constant 1.000000e+00 : f32
    %104 = vector.broadcast %cst_47 : f32 to vector<2x16xf32>
    %105 = arith.addf %104, %103 : vector<2x16xf32>
    %106 = arith.divf %104, %105 : vector<2x16xf32>
    %107 = vector.extract_strided_slice %84 {offsets = [0, 32], sizes = [2, 16], strides = [1, 1]} : vector<2x48xf32> to vector<2x16xf32>
    %108 = vector.extract_strided_slice %90 {offsets = [0, 32], sizes = [2, 16], strides = [1, 1]} : vector<2x48xf32> to vector<2x16xf32>
    %109 = arith.mulf %98, %108 : vector<2x16xf32>
    %110 = arith.addf %107, %109 : vector<2x16xf32>
    %111 = math.tanh %110 : vector<2x16xf32>
    %cst_48 = arith.constant 1.000000e+00 : f32
    %112 = vector.broadcast %cst_48 : f32 to vector<2x16xf32>
    %113 = arith.subf %112, %106 : vector<2x16xf32>
    %114 = arith.mulf %113, %111 : vector<2x16xf32>
    %115 = arith.mulf %106, %81 : vector<2x16xf32>
    %116 = arith.addf %114, %115 : vector<2x16xf32>
    %c1_i32 = arith.constant 1 : i32
    %c2_i32_49 = arith.constant 2 : i32
    %117 = arith.muli %c1_i32, %c2_i32_49 : i32
    %118 = arith.index_cast %117 : i32 to index
    %c0_50 = arith.constant 0 : index
    %119 = vector.load %arg10[%118, %c0_50] : memref<20x48xf32, #tpu.memory_space<vmem>>, vector<2x48xf32>
    %120 = arith.truncf %116 : vector<2x16xf32> to vector<2x16xbf16>
    %c0_51 = arith.constant 0 : index
    %c0_52 = arith.constant 0 : index
    %121 = vector.load %arg6[%c0_51, %c0_52] : memref<16x48xbf16, #tpu.memory_space<vmem>>, vector<16x48xbf16>
    %cst_53 = arith.constant dense<0.000000e+00> : vector<2x48xf32>
    %122 = tpu.matmul %120, %121, %cst_53 {dimension_numbers = #tpu.dot_dimension_numbers<[1], [0], [0], [1], [0, 0, 1, 1], [], []>} : vector<2x16xbf16>, vector<16x48xbf16>, vector<2x48xf32> -> vector<2x48xf32>
    %c0_54 = arith.constant 0 : index
    %c0_55 = arith.constant 0 : index
    %123 = vector.load %arg8[%c0_54, %c0_55] : memref<1x48xf32, #tpu.memory_space<vmem>>, vector<1x48xf32>
    %124 = vector.broadcast %123 : vector<1x48xf32> to vector<2x48xf32>
    %125 = arith.addf %122, %124 : vector<2x48xf32>
    %126 = vector.extract_strided_slice %119 {offsets = [0, 0], sizes = [2, 16], strides = [1, 1]} : vector<2x48xf32> to vector<2x16xf32>
    %127 = vector.extract_strided_slice %125 {offsets = [0, 0], sizes = [2, 16], strides = [1, 1]} : vector<2x48xf32> to vector<2x16xf32>
    %128 = arith.addf %126, %127 : vector<2x16xf32>
    %129 = arith.negf %128 : vector<2x16xf32>
    %130 = math.exp %129 : vector<2x16xf32>
    %cst_56 = arith.constant 1.000000e+00 : f32
    %131 = vector.broadcast %cst_56 : f32 to vector<2x16xf32>
    %132 = arith.addf %131, %130 : vector<2x16xf32>
    %133 = arith.divf %131, %132 : vector<2x16xf32>
    %134 = vector.extract_strided_slice %119 {offsets = [0, 16], sizes = [2, 16], strides = [1, 1]} : vector<2x48xf32> to vector<2x16xf32>
    %135 = vector.extract_strided_slice %125 {offsets = [0, 16], sizes = [2, 16], strides = [1, 1]} : vector<2x48xf32> to vector<2x16xf32>
    %136 = arith.addf %134, %135 : vector<2x16xf32>
    %137 = arith.negf %136 : vector<2x16xf32>
    %138 = math.exp %137 : vector<2x16xf32>
    %cst_57 = arith.constant 1.000000e+00 : f32
    %139 = vector.broadcast %cst_57 : f32 to vector<2x16xf32>
    %140 = arith.addf %139, %138 : vector<2x16xf32>
    %141 = arith.divf %139, %140 : vector<2x16xf32>
    %142 = vector.extract_strided_slice %119 {offsets = [0, 32], sizes = [2, 16], strides = [1, 1]} : vector<2x48xf32> to vector<2x16xf32>
    %143 = vector.extract_strided_slice %125 {offsets = [0, 32], sizes = [2, 16], strides = [1, 1]} : vector<2x48xf32> to vector<2x16xf32>
    %144 = arith.mulf %133, %143 : vector<2x16xf32>
    %145 = arith.addf %142, %144 : vector<2x16xf32>
    %146 = math.tanh %145 : vector<2x16xf32>
    %cst_58 = arith.constant 1.000000e+00 : f32
    %147 = vector.broadcast %cst_58 : f32 to vector<2x16xf32>
    %148 = arith.subf %147, %141 : vector<2x16xf32>
    %149 = arith.mulf %148, %146 : vector<2x16xf32>
    %150 = arith.mulf %141, %116 : vector<2x16xf32>
    %151 = arith.addf %149, %150 : vector<2x16xf32>
    %c2_i32_59 = arith.constant 2 : i32
    %c2_i32_60 = arith.constant 2 : i32
    %152 = arith.muli %c2_i32_59, %c2_i32_60 : i32
    %153 = arith.index_cast %152 : i32 to index
    %c0_61 = arith.constant 0 : index
    %154 = vector.load %arg10[%153, %c0_61] : memref<20x48xf32, #tpu.memory_space<vmem>>, vector<2x48xf32>
    %155 = arith.truncf %151 : vector<2x16xf32> to vector<2x16xbf16>
    %c0_62 = arith.constant 0 : index
    %c0_63 = arith.constant 0 : index
    %156 = vector.load %arg6[%c0_62, %c0_63] : memref<16x48xbf16, #tpu.memory_space<vmem>>, vector<16x48xbf16>
    %cst_64 = arith.constant dense<0.000000e+00> : vector<2x48xf32>
    %157 = tpu.matmul %155, %156, %cst_64 {dimension_numbers = #tpu.dot_dimension_numbers<[1], [0], [0], [1], [0, 0, 1, 1], [], []>} : vector<2x16xbf16>, vector<16x48xbf16>, vector<2x48xf32> -> vector<2x48xf32>
    %c0_65 = arith.constant 0 : index
    %c0_66 = arith.constant 0 : index
    %158 = vector.load %arg8[%c0_65, %c0_66] : memref<1x48xf32, #tpu.memory_space<vmem>>, vector<1x48xf32>
    %159 = vector.broadcast %158 : vector<1x48xf32> to vector<2x48xf32>
    %160 = arith.addf %157, %159 : vector<2x48xf32>
    %161 = vector.extract_strided_slice %154 {offsets = [0, 0], sizes = [2, 16], strides = [1, 1]} : vector<2x48xf32> to vector<2x16xf32>
    %162 = vector.extract_strided_slice %160 {offsets = [0, 0], sizes = [2, 16], strides = [1, 1]} : vector<2x48xf32> to vector<2x16xf32>
    %163 = arith.addf %161, %162 : vector<2x16xf32>
    %164 = arith.negf %163 : vector<2x16xf32>
    %165 = math.exp %164 : vector<2x16xf32>
    %cst_67 = arith.constant 1.000000e+00 : f32
    %166 = vector.broadcast %cst_67 : f32 to vector<2x16xf32>
    %167 = arith.addf %166, %165 : vector<2x16xf32>
    %168 = arith.divf %166, %167 : vector<2x16xf32>
    %169 = vector.extract_strided_slice %154 {offsets = [0, 16], sizes = [2, 16], strides = [1, 1]} : vector<2x48xf32> to vector<2x16xf32>
    %170 = vector.extract_strided_slice %160 {offsets = [0, 16], sizes = [2, 16], strides = [1, 1]} : vector<2x48xf32> to vector<2x16xf32>
    %171 = arith.addf %169, %170 : vector<2x16xf32>
    %172 = arith.negf %171 : vector<2x16xf32>
    %173 = math.exp %172 : vector<2x16xf32>
    %cst_68 = arith.constant 1.000000e+00 : f32
    %174 = vector.broadcast %cst_68 : f32 to vector<2x16xf32>
    %175 = arith.addf %174, %173 : vector<2x16xf32>
    %176 = arith.divf %174, %175 : vector<2x16xf32>
    %177 = vector.extract_strided_slice %154 {offsets = [0, 32], sizes = [2, 16], strides = [1, 1]} : vector<2x48xf32> to vector<2x16xf32>
    %178 = vector.extract_strided_slice %160 {offsets = [0, 32], sizes = [2, 16], strides = [1, 1]} : vector<2x48xf32> to vector<2x16xf32>
    %179 = arith.mulf %168, %178 : vector<2x16xf32>
    %180 = arith.addf %177, %179 : vector<2x16xf32>
    %181 = math.tanh %180 : vector<2x16xf32>
    %cst_69 = arith.constant 1.000000e+00 : f32
    %182 = vector.broadcast %cst_69 : f32 to vector<2x16xf32>
    %183 = arith.subf %182, %176 : vector<2x16xf32>
    %184 = arith.mulf %183, %181 : vector<2x16xf32>
    %185 = arith.mulf %176, %151 : vector<2x16xf32>
    %186 = arith.addf %184, %185 : vector<2x16xf32>
    %c3_i32 = arith.constant 3 : i32
    %c2_i32_70 = arith.constant 2 : i32
    %187 = arith.muli %c3_i32, %c2_i32_70 : i32
    %188 = arith.index_cast %187 : i32 to index
    %c0_71 = arith.constant 0 : index
    %189 = vector.load %arg10[%188, %c0_71] : memref<20x48xf32, #tpu.memory_space<vmem>>, vector<2x48xf32>
    %190 = arith.truncf %186 : vector<2x16xf32> to vector<2x16xbf16>
    %c0_72 = arith.constant 0 : index
    %c0_73 = arith.constant 0 : index
    %191 = vector.load %arg6[%c0_72, %c0_73] : memref<16x48xbf16, #tpu.memory_space<vmem>>, vector<16x48xbf16>
    %cst_74 = arith.constant dense<0.000000e+00> : vector<2x48xf32>
    %192 = tpu.matmul %190, %191, %cst_74 {dimension_numbers = #tpu.dot_dimension_numbers<[1], [0], [0], [1], [0, 0, 1, 1], [], []>} : vector<2x16xbf16>, vector<16x48xbf16>, vector<2x48xf32> -> vector<2x48xf32>
    %c0_75 = arith.constant 0 : index
    %c0_76 = arith.constant 0 : index
    %193 = vector.load %arg8[%c0_75, %c0_76] : memref<1x48xf32, #tpu.memory_space<vmem>>, vector<1x48xf32>
    %194 = vector.broadcast %193 : vector<1x48xf32> to vector<2x48xf32>
    %195 = arith.addf %192, %194 : vector<2x48xf32>
    %196 = vector.extract_strided_slice %189 {offsets = [0, 0], sizes = [2, 16], strides = [1, 1]} : vector<2x48xf32> to vector<2x16xf32>
    %197 = vector.extract_strided_slice %195 {offsets = [0, 0], sizes = [2, 16], strides = [1, 1]} : vector<2x48xf32> to vector<2x16xf32>
    %198 = arith.addf %196, %197 : vector<2x16xf32>
    %199 = arith.negf %198 : vector<2x16xf32>
    %200 = math.exp %199 : vector<2x16xf32>
    %cst_77 = arith.constant 1.000000e+00 : f32
    %201 = vector.broadcast %cst_77 : f32 to vector<2x16xf32>
    %202 = arith.addf %201, %200 : vector<2x16xf32>
    %203 = arith.divf %201, %202 : vector<2x16xf32>
    %204 = vector.extract_strided_slice %189 {offsets = [0, 16], sizes = [2, 16], strides = [1, 1]} : vector<2x48xf32> to vector<2x16xf32>
    %205 = vector.extract_strided_slice %195 {offsets = [0, 16], sizes = [2, 16], strides = [1, 1]} : vector<2x48xf32> to vector<2x16xf32>
    %206 = arith.addf %204, %205 : vector<2x16xf32>
    %207 = arith.negf %206 : vector<2x16xf32>
    %208 = math.exp %207 : vector<2x16xf32>
    %cst_78 = arith.constant 1.000000e+00 : f32
    %209 = vector.broadcast %cst_78 : f32 to vector<2x16xf32>
    %210 = arith.addf %209, %208 : vector<2x16xf32>
    %211 = arith.divf %209, %210 : vector<2x16xf32>
    %212 = vector.extract_strided_slice %189 {offsets = [0, 32], sizes = [2, 16], strides = [1, 1]} : vector<2x48xf32> to vector<2x16xf32>
    %213 = vector.extract_strided_slice %195 {offsets = [0, 32], sizes = [2, 16], strides = [1, 1]} : vector<2x48xf32> to vector<2x16xf32>
    %214 = arith.mulf %203, %213 : vector<2x16xf32>
    %215 = arith.addf %212, %214 : vector<2x16xf32>
    %216 = math.tanh %215 : vector<2x16xf32>
    %cst_79 = arith.constant 1.000000e+00 : f32
    %217 = vector.broadcast %cst_79 : f32 to vector<2x16xf32>
    %218 = arith.subf %217, %211 : vector<2x16xf32>
    %219 = arith.mulf %218, %216 : vector<2x16xf32>
    %220 = arith.mulf %211, %186 : vector<2x16xf32>
    %221 = arith.addf %219, %220 : vector<2x16xf32>
    %c4_i32 = arith.constant 4 : i32
    %c2_i32_80 = arith.constant 2 : i32
    %222 = arith.muli %c4_i32, %c2_i32_80 : i32
    %223 = arith.index_cast %222 : i32 to index
    %c0_81 = arith.constant 0 : index
    %224 = vector.load %arg10[%223, %c0_81] : memref<20x48xf32, #tpu.memory_space<vmem>>, vector<2x48xf32>
    %225 = arith.truncf %221 : vector<2x16xf32> to vector<2x16xbf16>
    %c0_82 = arith.constant 0 : index
    %c0_83 = arith.constant 0 : index
    %226 = vector.load %arg6[%c0_82, %c0_83] : memref<16x48xbf16, #tpu.memory_space<vmem>>, vector<16x48xbf16>
    %cst_84 = arith.constant dense<0.000000e+00> : vector<2x48xf32>
    %227 = tpu.matmul %225, %226, %cst_84 {dimension_numbers = #tpu.dot_dimension_numbers<[1], [0], [0], [1], [0, 0, 1, 1], [], []>} : vector<2x16xbf16>, vector<16x48xbf16>, vector<2x48xf32> -> vector<2x48xf32>
    %c0_85 = arith.constant 0 : index
    %c0_86 = arith.constant 0 : index
    %228 = vector.load %arg8[%c0_85, %c0_86] : memref<1x48xf32, #tpu.memory_space<vmem>>, vector<1x48xf32>
    %229 = vector.broadcast %228 : vector<1x48xf32> to vector<2x48xf32>
    %230 = arith.addf %227, %229 : vector<2x48xf32>
    %231 = vector.extract_strided_slice %224 {offsets = [0, 0], sizes = [2, 16], strides = [1, 1]} : vector<2x48xf32> to vector<2x16xf32>
    %232 = vector.extract_strided_slice %230 {offsets = [0, 0], sizes = [2, 16], strides = [1, 1]} : vector<2x48xf32> to vector<2x16xf32>
    %233 = arith.addf %231, %232 : vector<2x16xf32>
    %234 = arith.negf %233 : vector<2x16xf32>
    %235 = math.exp %234 : vector<2x16xf32>
    %cst_87 = arith.constant 1.000000e+00 : f32
    %236 = vector.broadcast %cst_87 : f32 to vector<2x16xf32>
    %237 = arith.addf %236, %235 : vector<2x16xf32>
    %238 = arith.divf %236, %237 : vector<2x16xf32>
    %239 = vector.extract_strided_slice %224 {offsets = [0, 16], sizes = [2, 16], strides = [1, 1]} : vector<2x48xf32> to vector<2x16xf32>
    %240 = vector.extract_strided_slice %230 {offsets = [0, 16], sizes = [2, 16], strides = [1, 1]} : vector<2x48xf32> to vector<2x16xf32>
    %241 = arith.addf %239, %240 : vector<2x16xf32>
    %242 = arith.negf %241 : vector<2x16xf32>
    %243 = math.exp %242 : vector<2x16xf32>
    %cst_88 = arith.constant 1.000000e+00 : f32
    %244 = vector.broadcast %cst_88 : f32 to vector<2x16xf32>
    %245 = arith.addf %244, %243 : vector<2x16xf32>
    %246 = arith.divf %244, %245 : vector<2x16xf32>
    %247 = vector.extract_strided_slice %224 {offsets = [0, 32], sizes = [2, 16], strides = [1, 1]} : vector<2x48xf32> to vector<2x16xf32>
    %248 = vector.extract_strided_slice %230 {offsets = [0, 32], sizes = [2, 16], strides = [1, 1]} : vector<2x48xf32> to vector<2x16xf32>
    %249 = arith.mulf %238, %248 : vector<2x16xf32>
    %250 = arith.addf %247, %249 : vector<2x16xf32>
    %251 = math.tanh %250 : vector<2x16xf32>
    %cst_89 = arith.constant 1.000000e+00 : f32
    %252 = vector.broadcast %cst_89 : f32 to vector<2x16xf32>
    %253 = arith.subf %252, %246 : vector<2x16xf32>
    %254 = arith.mulf %253, %251 : vector<2x16xf32>
    %255 = arith.mulf %246, %221 : vector<2x16xf32>
    %256 = arith.addf %254, %255 : vector<2x16xf32>
    %c5_i32 = arith.constant 5 : i32
    %c2_i32_90 = arith.constant 2 : i32
    %257 = arith.muli %c5_i32, %c2_i32_90 : i32
    %258 = arith.index_cast %257 : i32 to index
    %c0_91 = arith.constant 0 : index
    %259 = vector.load %arg10[%258, %c0_91] : memref<20x48xf32, #tpu.memory_space<vmem>>, vector<2x48xf32>
    %260 = arith.truncf %256 : vector<2x16xf32> to vector<2x16xbf16>
    %c0_92 = arith.constant 0 : index
    %c0_93 = arith.constant 0 : index
    %261 = vector.load %arg6[%c0_92, %c0_93] : memref<16x48xbf16, #tpu.memory_space<vmem>>, vector<16x48xbf16>
    %cst_94 = arith.constant dense<0.000000e+00> : vector<2x48xf32>
    %262 = tpu.matmul %260, %261, %cst_94 {dimension_numbers = #tpu.dot_dimension_numbers<[1], [0], [0], [1], [0, 0, 1, 1], [], []>} : vector<2x16xbf16>, vector<16x48xbf16>, vector<2x48xf32> -> vector<2x48xf32>
    %c0_95 = arith.constant 0 : index
    %c0_96 = arith.constant 0 : index
    %263 = vector.load %arg8[%c0_95, %c0_96] : memref<1x48xf32, #tpu.memory_space<vmem>>, vector<1x48xf32>
    %264 = vector.broadcast %263 : vector<1x48xf32> to vector<2x48xf32>
    %265 = arith.addf %262, %264 : vector<2x48xf32>
    %266 = vector.extract_strided_slice %259 {offsets = [0, 0], sizes = [2, 16], strides = [1, 1]} : vector<2x48xf32> to vector<2x16xf32>
    %267 = vector.extract_strided_slice %265 {offsets = [0, 0], sizes = [2, 16], strides = [1, 1]} : vector<2x48xf32> to vector<2x16xf32>
    %268 = arith.addf %266, %267 : vector<2x16xf32>
    %269 = arith.negf %268 : vector<2x16xf32>
    %270 = math.exp %269 : vector<2x16xf32>
    %cst_97 = arith.constant 1.000000e+00 : f32
    %271 = vector.broadcast %cst_97 : f32 to vector<2x16xf32>
    %272 = arith.addf %271, %270 : vector<2x16xf32>
    %273 = arith.divf %271, %272 : vector<2x16xf32>
    %274 = vector.extract_strided_slice %259 {offsets = [0, 16], sizes = [2, 16], strides = [1, 1]} : vector<2x48xf32> to vector<2x16xf32>
    %275 = vector.extract_strided_slice %265 {offsets = [0, 16], sizes = [2, 16], strides = [1, 1]} : vector<2x48xf32> to vector<2x16xf32>
    %276 = arith.addf %274, %275 : vector<2x16xf32>
    %277 = arith.negf %276 : vector<2x16xf32>
    %278 = math.exp %277 : vector<2x16xf32>
    %cst_98 = arith.constant 1.000000e+00 : f32
    %279 = vector.broadcast %cst_98 : f32 to vector<2x16xf32>
    %280 = arith.addf %279, %278 : vector<2x16xf32>
    %281 = arith.divf %279, %280 : vector<2x16xf32>
    %282 = vector.extract_strided_slice %259 {offsets = [0, 32], sizes = [2, 16], strides = [1, 1]} : vector<2x48xf32> to vector<2x16xf32>
    %283 = vector.extract_strided_slice %265 {offsets = [0, 32], sizes = [2, 16], strides = [1, 1]} : vector<2x48xf32> to vector<2x16xf32>
    %284 = arith.mulf %273, %283 : vector<2x16xf32>
    %285 = arith.addf %282, %284 : vector<2x16xf32>
    %286 = math.tanh %285 : vector<2x16xf32>
    %cst_99 = arith.constant 1.000000e+00 : f32
    %287 = vector.broadcast %cst_99 : f32 to vector<2x16xf32>
    %288 = arith.subf %287, %281 : vector<2x16xf32>
    %289 = arith.mulf %288, %286 : vector<2x16xf32>
    %290 = arith.mulf %281, %256 : vector<2x16xf32>
    %291 = arith.addf %289, %290 : vector<2x16xf32>
    %c6_i32 = arith.constant 6 : i32
    %c2_i32_100 = arith.constant 2 : i32
    %292 = arith.muli %c6_i32, %c2_i32_100 : i32
    %293 = arith.index_cast %292 : i32 to index
    %c0_101 = arith.constant 0 : index
    %294 = vector.load %arg10[%293, %c0_101] : memref<20x48xf32, #tpu.memory_space<vmem>>, vector<2x48xf32>
    %295 = arith.truncf %291 : vector<2x16xf32> to vector<2x16xbf16>
    %c0_102 = arith.constant 0 : index
    %c0_103 = arith.constant 0 : index
    %296 = vector.load %arg6[%c0_102, %c0_103] : memref<16x48xbf16, #tpu.memory_space<vmem>>, vector<16x48xbf16>
    %cst_104 = arith.constant dense<0.000000e+00> : vector<2x48xf32>
    %297 = tpu.matmul %295, %296, %cst_104 {dimension_numbers = #tpu.dot_dimension_numbers<[1], [0], [0], [1], [0, 0, 1, 1], [], []>} : vector<2x16xbf16>, vector<16x48xbf16>, vector<2x48xf32> -> vector<2x48xf32>
    %c0_105 = arith.constant 0 : index
    %c0_106 = arith.constant 0 : index
    %298 = vector.load %arg8[%c0_105, %c0_106] : memref<1x48xf32, #tpu.memory_space<vmem>>, vector<1x48xf32>
    %299 = vector.broadcast %298 : vector<1x48xf32> to vector<2x48xf32>
    %300 = arith.addf %297, %299 : vector<2x48xf32>
    %301 = vector.extract_strided_slice %294 {offsets = [0, 0], sizes = [2, 16], strides = [1, 1]} : vector<2x48xf32> to vector<2x16xf32>
    %302 = vector.extract_strided_slice %300 {offsets = [0, 0], sizes = [2, 16], strides = [1, 1]} : vector<2x48xf32> to vector<2x16xf32>
    %303 = arith.addf %301, %302 : vector<2x16xf32>
    %304 = arith.negf %303 : vector<2x16xf32>
    %305 = math.exp %304 : vector<2x16xf32>
    %cst_107 = arith.constant 1.000000e+00 : f32
    %306 = vector.broadcast %cst_107 : f32 to vector<2x16xf32>
    %307 = arith.addf %306, %305 : vector<2x16xf32>
    %308 = arith.divf %306, %307 : vector<2x16xf32>
    %309 = vector.extract_strided_slice %294 {offsets = [0, 16], sizes = [2, 16], strides = [1, 1]} : vector<2x48xf32> to vector<2x16xf32>
    %310 = vector.extract_strided_slice %300 {offsets = [0, 16], sizes = [2, 16], strides = [1, 1]} : vector<2x48xf32> to vector<2x16xf32>
    %311 = arith.addf %309, %310 : vector<2x16xf32>
    %312 = arith.negf %311 : vector<2x16xf32>
    %313 = math.exp %312 : vector<2x16xf32>
    %cst_108 = arith.constant 1.000000e+00 : f32
    %314 = vector.broadcast %cst_108 : f32 to vector<2x16xf32>
    %315 = arith.addf %314, %313 : vector<2x16xf32>
    %316 = arith.divf %314, %315 : vector<2x16xf32>
    %317 = vector.extract_strided_slice %294 {offsets = [0, 32], sizes = [2, 16], strides = [1, 1]} : vector<2x48xf32> to vector<2x16xf32>
    %318 = vector.extract_strided_slice %300 {offsets = [0, 32], sizes = [2, 16], strides = [1, 1]} : vector<2x48xf32> to vector<2x16xf32>
    %319 = arith.mulf %308, %318 : vector<2x16xf32>
    %320 = arith.addf %317, %319 : vector<2x16xf32>
    %321 = math.tanh %320 : vector<2x16xf32>
    %cst_109 = arith.constant 1.000000e+00 : f32
    %322 = vector.broadcast %cst_109 : f32 to vector<2x16xf32>
    %323 = arith.subf %322, %316 : vector<2x16xf32>
    %324 = arith.mulf %323, %321 : vector<2x16xf32>
    %325 = arith.mulf %316, %291 : vector<2x16xf32>
    %326 = arith.addf %324, %325 : vector<2x16xf32>
    %c7_i32 = arith.constant 7 : i32
    %c2_i32_110 = arith.constant 2 : i32
    %327 = arith.muli %c7_i32, %c2_i32_110 : i32
    %328 = arith.index_cast %327 : i32 to index
    %c0_111 = arith.constant 0 : index
    %329 = vector.load %arg10[%328, %c0_111] : memref<20x48xf32, #tpu.memory_space<vmem>>, vector<2x48xf32>
    %330 = arith.truncf %326 : vector<2x16xf32> to vector<2x16xbf16>
    %c0_112 = arith.constant 0 : index
    %c0_113 = arith.constant 0 : index
    %331 = vector.load %arg6[%c0_112, %c0_113] : memref<16x48xbf16, #tpu.memory_space<vmem>>, vector<16x48xbf16>
    %cst_114 = arith.constant dense<0.000000e+00> : vector<2x48xf32>
    %332 = tpu.matmul %330, %331, %cst_114 {dimension_numbers = #tpu.dot_dimension_numbers<[1], [0], [0], [1], [0, 0, 1, 1], [], []>} : vector<2x16xbf16>, vector<16x48xbf16>, vector<2x48xf32> -> vector<2x48xf32>
    %c0_115 = arith.constant 0 : index
    %c0_116 = arith.constant 0 : index
    %333 = vector.load %arg8[%c0_115, %c0_116] : memref<1x48xf32, #tpu.memory_space<vmem>>, vector<1x48xf32>
    %334 = vector.broadcast %333 : vector<1x48xf32> to vector<2x48xf32>
    %335 = arith.addf %332, %334 : vector<2x48xf32>
    %336 = vector.extract_strided_slice %329 {offsets = [0, 0], sizes = [2, 16], strides = [1, 1]} : vector<2x48xf32> to vector<2x16xf32>
    %337 = vector.extract_strided_slice %335 {offsets = [0, 0], sizes = [2, 16], strides = [1, 1]} : vector<2x48xf32> to vector<2x16xf32>
    %338 = arith.addf %336, %337 : vector<2x16xf32>
    %339 = arith.negf %338 : vector<2x16xf32>
    %340 = math.exp %339 : vector<2x16xf32>
    %cst_117 = arith.constant 1.000000e+00 : f32
    %341 = vector.broadcast %cst_117 : f32 to vector<2x16xf32>
    %342 = arith.addf %341, %340 : vector<2x16xf32>
    %343 = arith.divf %341, %342 : vector<2x16xf32>
    %344 = vector.extract_strided_slice %329 {offsets = [0, 16], sizes = [2, 16], strides = [1, 1]} : vector<2x48xf32> to vector<2x16xf32>
    %345 = vector.extract_strided_slice %335 {offsets = [0, 16], sizes = [2, 16], strides = [1, 1]} : vector<2x48xf32> to vector<2x16xf32>
    %346 = arith.addf %344, %345 : vector<2x16xf32>
    %347 = arith.negf %346 : vector<2x16xf32>
    %348 = math.exp %347 : vector<2x16xf32>
    %cst_118 = arith.constant 1.000000e+00 : f32
    %349 = vector.broadcast %cst_118 : f32 to vector<2x16xf32>
    %350 = arith.addf %349, %348 : vector<2x16xf32>
    %351 = arith.divf %349, %350 : vector<2x16xf32>
    %352 = vector.extract_strided_slice %329 {offsets = [0, 32], sizes = [2, 16], strides = [1, 1]} : vector<2x48xf32> to vector<2x16xf32>
    %353 = vector.extract_strided_slice %335 {offsets = [0, 32], sizes = [2, 16], strides = [1, 1]} : vector<2x48xf32> to vector<2x16xf32>
    %354 = arith.mulf %343, %353 : vector<2x16xf32>
    %355 = arith.addf %352, %354 : vector<2x16xf32>
    %356 = math.tanh %355 : vector<2x16xf32>
    %cst_119 = arith.constant 1.000000e+00 : f32
    %357 = vector.broadcast %cst_119 : f32 to vector<2x16xf32>
    %358 = arith.subf %357, %351 : vector<2x16xf32>
    %359 = arith.mulf %358, %356 : vector<2x16xf32>
    %360 = arith.mulf %351, %326 : vector<2x16xf32>
    %361 = arith.addf %359, %360 : vector<2x16xf32>
    %c8_i32 = arith.constant 8 : i32
    %c2_i32_120 = arith.constant 2 : i32
    %362 = arith.muli %c8_i32, %c2_i32_120 : i32
    %363 = arith.index_cast %362 : i32 to index
    %c0_121 = arith.constant 0 : index
    %364 = vector.load %arg10[%363, %c0_121] : memref<20x48xf32, #tpu.memory_space<vmem>>, vector<2x48xf32>
    %365 = arith.truncf %361 : vector<2x16xf32> to vector<2x16xbf16>
    %c0_122 = arith.constant 0 : index
    %c0_123 = arith.constant 0 : index
    %366 = vector.load %arg6[%c0_122, %c0_123] : memref<16x48xbf16, #tpu.memory_space<vmem>>, vector<16x48xbf16>
    %cst_124 = arith.constant dense<0.000000e+00> : vector<2x48xf32>
    %367 = tpu.matmul %365, %366, %cst_124 {dimension_numbers = #tpu.dot_dimension_numbers<[1], [0], [0], [1], [0, 0, 1, 1], [], []>} : vector<2x16xbf16>, vector<16x48xbf16>, vector<2x48xf32> -> vector<2x48xf32>
    %c0_125 = arith.constant 0 : index
    %c0_126 = arith.constant 0 : index
    %368 = vector.load %arg8[%c0_125, %c0_126] : memref<1x48xf32, #tpu.memory_space<vmem>>, vector<1x48xf32>
    %369 = vector.broadcast %368 : vector<1x48xf32> to vector<2x48xf32>
    %370 = arith.addf %367, %369 : vector<2x48xf32>
    %371 = vector.extract_strided_slice %364 {offsets = [0, 0], sizes = [2, 16], strides = [1, 1]} : vector<2x48xf32> to vector<2x16xf32>
    %372 = vector.extract_strided_slice %370 {offsets = [0, 0], sizes = [2, 16], strides = [1, 1]} : vector<2x48xf32> to vector<2x16xf32>
    %373 = arith.addf %371, %372 : vector<2x16xf32>
    %374 = arith.negf %373 : vector<2x16xf32>
    %375 = math.exp %374 : vector<2x16xf32>
    %cst_127 = arith.constant 1.000000e+00 : f32
    %376 = vector.broadcast %cst_127 : f32 to vector<2x16xf32>
    %377 = arith.addf %376, %375 : vector<2x16xf32>
    %378 = arith.divf %376, %377 : vector<2x16xf32>
    %379 = vector.extract_strided_slice %364 {offsets = [0, 16], sizes = [2, 16], strides = [1, 1]} : vector<2x48xf32> to vector<2x16xf32>
    %380 = vector.extract_strided_slice %370 {offsets = [0, 16], sizes = [2, 16], strides = [1, 1]} : vector<2x48xf32> to vector<2x16xf32>
    %381 = arith.addf %379, %380 : vector<2x16xf32>
    %382 = arith.negf %381 : vector<2x16xf32>
    %383 = math.exp %382 : vector<2x16xf32>
    %cst_128 = arith.constant 1.000000e+00 : f32
    %384 = vector.broadcast %cst_128 : f32 to vector<2x16xf32>
    %385 = arith.addf %384, %383 : vector<2x16xf32>
    %386 = arith.divf %384, %385 : vector<2x16xf32>
    %387 = vector.extract_strided_slice %364 {offsets = [0, 32], sizes = [2, 16], strides = [1, 1]} : vector<2x48xf32> to vector<2x16xf32>
    %388 = vector.extract_strided_slice %370 {offsets = [0, 32], sizes = [2, 16], strides = [1, 1]} : vector<2x48xf32> to vector<2x16xf32>
    %389 = arith.mulf %378, %388 : vector<2x16xf32>
    %390 = arith.addf %387, %389 : vector<2x16xf32>
    %391 = math.tanh %390 : vector<2x16xf32>
    %cst_129 = arith.constant 1.000000e+00 : f32
    %392 = vector.broadcast %cst_129 : f32 to vector<2x16xf32>
    %393 = arith.subf %392, %386 : vector<2x16xf32>
    %394 = arith.mulf %393, %391 : vector<2x16xf32>
    %395 = arith.mulf %386, %361 : vector<2x16xf32>
    %396 = arith.addf %394, %395 : vector<2x16xf32>
    %c9_i32 = arith.constant 9 : i32
    %c2_i32_130 = arith.constant 2 : i32
    %397 = arith.muli %c9_i32, %c2_i32_130 : i32
    %398 = arith.index_cast %397 : i32 to index
    %c0_131 = arith.constant 0 : index
    %399 = vector.load %arg10[%398, %c0_131] : memref<20x48xf32, #tpu.memory_space<vmem>>, vector<2x48xf32>
    %400 = arith.truncf %396 : vector<2x16xf32> to vector<2x16xbf16>
    %c0_132 = arith.constant 0 : index
    %c0_133 = arith.constant 0 : index
    %401 = vector.load %arg6[%c0_132, %c0_133] : memref<16x48xbf16, #tpu.memory_space<vmem>>, vector<16x48xbf16>
    %cst_134 = arith.constant dense<0.000000e+00> : vector<2x48xf32>
    %402 = tpu.matmul %400, %401, %cst_134 {dimension_numbers = #tpu.dot_dimension_numbers<[1], [0], [0], [1], [0, 0, 1, 1], [], []>} : vector<2x16xbf16>, vector<16x48xbf16>, vector<2x48xf32> -> vector<2x48xf32>
    %c0_135 = arith.constant 0 : index
    %c0_136 = arith.constant 0 : index
    %403 = vector.load %arg8[%c0_135, %c0_136] : memref<1x48xf32, #tpu.memory_space<vmem>>, vector<1x48xf32>
    %404 = vector.broadcast %403 : vector<1x48xf32> to vector<2x48xf32>
    %405 = arith.addf %402, %404 : vector<2x48xf32>
    %406 = vector.extract_strided_slice %399 {offsets = [0, 0], sizes = [2, 16], strides = [1, 1]} : vector<2x48xf32> to vector<2x16xf32>
    %407 = vector.extract_strided_slice %405 {offsets = [0, 0], sizes = [2, 16], strides = [1, 1]} : vector<2x48xf32> to vector<2x16xf32>
    %408 = arith.addf %406, %407 : vector<2x16xf32>
    %409 = arith.negf %408 : vector<2x16xf32>
    %410 = math.exp %409 : vector<2x16xf32>
    %cst_137 = arith.constant 1.000000e+00 : f32
    %411 = vector.broadcast %cst_137 : f32 to vector<2x16xf32>
    %412 = arith.addf %411, %410 : vector<2x16xf32>
    %413 = arith.divf %411, %412 : vector<2x16xf32>
    %414 = vector.extract_strided_slice %399 {offsets = [0, 16], sizes = [2, 16], strides = [1, 1]} : vector<2x48xf32> to vector<2x16xf32>
    %415 = vector.extract_strided_slice %405 {offsets = [0, 16], sizes = [2, 16], strides = [1, 1]} : vector<2x48xf32> to vector<2x16xf32>
    %416 = arith.addf %414, %415 : vector<2x16xf32>
    %417 = arith.negf %416 : vector<2x16xf32>
    %418 = math.exp %417 : vector<2x16xf32>
    %cst_138 = arith.constant 1.000000e+00 : f32
    %419 = vector.broadcast %cst_138 : f32 to vector<2x16xf32>
    %420 = arith.addf %419, %418 : vector<2x16xf32>
    %421 = arith.divf %419, %420 : vector<2x16xf32>
    %422 = vector.extract_strided_slice %399 {offsets = [0, 32], sizes = [2, 16], strides = [1, 1]} : vector<2x48xf32> to vector<2x16xf32>
    %423 = vector.extract_strided_slice %405 {offsets = [0, 32], sizes = [2, 16], strides = [1, 1]} : vector<2x48xf32> to vector<2x16xf32>
    %424 = arith.mulf %413, %423 : vector<2x16xf32>
    %425 = arith.addf %422, %424 : vector<2x16xf32>
    %426 = math.tanh %425 : vector<2x16xf32>
    %cst_139 = arith.constant 1.000000e+00 : f32
    %427 = vector.broadcast %cst_139 : f32 to vector<2x16xf32>
    %428 = arith.subf %427, %421 : vector<2x16xf32>
    %429 = arith.mulf %428, %426 : vector<2x16xf32>
    %430 = arith.mulf %421, %396 : vector<2x16xf32>
    %431 = arith.addf %429, %430 : vector<2x16xf32>
    %c10_i32 = arith.constant 10 : i32
    %c0_140 = arith.constant 0 : index
    %c0_141 = arith.constant 0 : index
    %c16 = arith.constant 16 : index
    %432 = vector.load %arg9[%c0_140, %c0_141, %c16] : memref<1x2x32xf32, #tpu.memory_space<vmem>>, vector<1x2x16xf32>
    %433 = vector.shape_cast %432 : vector<1x2x16xf32> to vector<2x16xf32>
    %434 = vector.shape_cast %431 : vector<2x16xf32> to vector<1x2x16xf32>
    tpu.vector_store %arg9[%c0_140, %c0_141, %c16], %434 {strides = array<i32>} : memref<1x2x32xf32, #tpu.memory_space<vmem>>, vector<1x2x16xf32>,
    return
  }
  func.func @transform_0(%arg0: i32) -> (i32, i32, i32) {
    %c0_i32 = arith.constant 0 : i32
    %c0_i32_0 = arith.constant 0 : i32
    %c0_i32_1 = arith.constant 0 : i32
    return %arg0, %c0_i32, %c0_i32_0 : i32, i32, i32
  }
  func.func @transform_1(%arg0: i32) -> (i32, i32, i32) {
    %c0_i32 = arith.constant 0 : i32
    %c0_i32_0 = arith.constant 0 : i32
    %c0_i32_1 = arith.constant 0 : i32
    %c0_i32_2 = arith.constant 0 : i32
    return %c0_i32, %c0_i32_0, %c0_i32_1 : i32, i32, i32
  }
  func.func @transform_2(%arg0: i32) -> (i32, i32, i32) {
    %c0_i32 = arith.constant 0 : i32
    %c0_i32_0 = arith.constant 0 : i32
    %c0_i32_1 = arith.constant 0 : i32
    %c0_i32_2 = arith.constant 0 : i32
    return %c0_i32, %c0_i32_0, %c0_i32_1 : i32, i32, i32
  }
  func.func @transform_3(%arg0: i32) -> (i32, i32, i32) {
    %c0_i32 = arith.constant 0 : i32
    %c0_i32_0 = arith.constant 0 : i32
    %c0_i32_1 = arith.constant 0 : i32
    %c0_i32_2 = arith.constant 0 : i32
    return %c0_i32, %c0_i32_0, %c0_i32_1 : i32, i32, i32
  }
  func.func @transform_4(%arg0: i32) -> (i32, i32) {
    %c0_i32 = arith.constant 0 : i32
    %c0_i32_0 = arith.constant 0 : i32
    %c0_i32_1 = arith.constant 0 : i32
    return %c0_i32, %c0_i32_0 : i32, i32
  }
  func.func @transform_5(%arg0: i32) -> (i32, i32) {
    %c0_i32 = arith.constant 0 : i32
    %c0_i32_0 = arith.constant 0 : i32
    %c0_i32_1 = arith.constant 0 : i32
    return %c0_i32, %c0_i32_0 : i32, i32
  }
  func.func @transform_6(%arg0: i32) -> (i32, i32) {
    %c0_i32 = arith.constant 0 : i32
    %c0_i32_0 = arith.constant 0 : i32
    %c0_i32_1 = arith.constant 0 : i32
    return %c0_i32, %c0_i32_0 : i32, i32
  }
  func.func @transform_7(%arg0: i32) -> (i32, i32) {
    %c0_i32 = arith.constant 0 : i32
    %c0_i32_0 = arith.constant 0 : i32
    %c0_i32_1 = arith.constant 0 : i32
    return %c0_i32, %c0_i32_0 : i32, i32
  }
  func.func @transform_8(%arg0: i32) -> (i32, i32, i32) {
    %c0_i32 = arith.constant 0 : i32
    %c0_i32_0 = arith.constant 0 : i32
    %c0_i32_1 = arith.constant 0 : i32
    return %arg0, %c0_i32, %c0_i32_0 : i32, i32, i32
  }
}

</mosaic_0001>

<llo_original>
// kernel: tpu_custom_call.1
$region0: #{tpu_custom_call.1}
  #allocation0 [shape = 'u32[]', space=smem, size = 0x4, offset = 0x4, fixed_abs, tag = 'smem constant byte address 0x4 - core index']
  #allocation1 [shape = 'u32[144,128]{1,0:T(1,128)}', space=vmem, size = 0x12000, scoped, tag = 'internal scratch']
  #allocation2 [shape = 'f32[20,48]{1,0:T(8,128)}', space=vmem, size = 0x3000, scoped, tag = 'scratch operand']
  %s0 = inlined_call_operand.vmem [shape: bf16[3,20,16], index: 0, kind: input, shape index: {}]
  %s1 = inlined_call_operand.vmem [shape: bf16[2,16,8], index: 1, kind: input, shape index: {}]
  %s2 = inlined_call_operand.vmem [shape: bf16[3,16,8], index: 2, kind: input, shape index: {}]
  %s3 = inlined_call_operand.vmem [shape: f32[2,1,8], index: 3, kind: input, shape index: {}]
  %s4 = inlined_call_operand.vmem [shape: bf16[16,48], index: 4, kind: input, shape index: {}]
  %s5 = inlined_call_operand.vmem [shape: bf16[16,48], index: 5, kind: input, shape index: {}]
  %s6 = inlined_call_operand.vmem [shape: f32[1,48], index: 6, kind: input, shape index: {}]
  %s7 = inlined_call_operand.vmem [shape: f32[1,48], index: 7, kind: input, shape index: {}]
  %s8 = inlined_call_operand.hbm [shape: f32[3,2,32], index: 8, kind: output, shape index: {}]
  %s9 = sld [smem:[#allocation0]]
  $region65: #{tpu_custom_call.1} parent=0
    _
  %s11 = ssub.s32 1, %s9
  %s12 = scalar_select 0, %s11, %s9
  $region1: #{tpu_custom_call.1} parent=0
    #allocation3 [shape = 'u8[2048]{0}', space=vmem, size = 0x800, scoped, tag = 'output window, operand 0']
    #allocation4 [shape = 's32[2]{0}', space=sflag, size = 0x8, scoped, tag = 'scoped memory for tpu_custom_call.1']
    %13 = vsyncpa [#allocation4], 0
    %s14 = scalar_lea.sflag [#allocation4], 1
    %15 = vsyncpa %s14, 0
    loop: start=0, step=1, limit=5
    $region2: #{tpu_custom_call.1} parent=1 // loop_pre_header
      _
    $region3: #{tpu_custom_call.1} parent=1 // loop_header
      %s17 = sphi 0, %s21
      %p18 = scmp.ge.s32.totalorder %s17, 5
      %s27 = sphi 0, %s29
      %s30 = sphi 0, %s27
      %s31 = sphi 0, %s30
      %s47 = sphi 0, %s31
      %s51 = sphi 0, %s51
      %s53 = sphi 0, %s51
      %s54 = sphi 0, %s53
      %s68 = sphi 0, %s54
      %s72 = sphi 0, %s72
      %s74 = sphi 0, %s72
      %s75 = sphi 0, %s74
      %s89 = sphi 0, %s75
      %s93 = sphi 0, %s93
      %s95 = sphi 0, %s93
      %s96 = sphi 0, %s95
      %s110 = sphi 0, %s96
      %s114 = sphi 0, %s114
      %s116 = sphi 0, %s114
      %s117 = sphi 0, %s116
      %s131 = sphi 0, %s117
      %s135 = sphi 0, %s135
      %s137 = sphi 0, %s135
      %s138 = sphi 0, %s137
      %s152 = sphi 0, %s138
      %s156 = sphi 0, %s156
      %s158 = sphi 0, %s156
      %s159 = sphi 0, %s158
      %s173 = sphi 0, %s159
      %s177 = sphi 0, %s177
      %s179 = sphi 0, %s177
      %s180 = sphi 0, %s179
      %s194 = sphi 0, %s180
      %s200 = sphi 0, %s202
      %s203 = sphi 0, %s200
      %s204 = sphi 0, %s203
      %s220 = sphi 0, %s204
    $region4: #{tpu_custom_call.1} parent=1 // loop_header_branch
      %20 = sbr.rel (%p18) target = $region8
    $region5: #{tpu_custom_call.1} parent=1 // loop_body
      %s22 = ssub.s32 %s17, 1
      %s23 = ssub.s32 %s17, 2
      %s24 = sadd.s32 %s17, 1
      %s25 = ssub.s32 %s17, %s24
      %p26 = scmp.eq.s32.totalorder %s25, 0
      %s28 = sadd.s32 %s27, 1
      %s29 = scalar_select %p26, %s27, %s28
      %p32 = pneg %p26
      %p33 = scmp.eq.s32.totalorder %s17, 2
      %p34 = por %p32, %p33
      %p35 = scmp.ne.s32.totalorder %s27, %s30
      %p36 = scmp.eq.s32.totalorder %s17, 0
      %p37 = por %p35, %p36
      %p38 = scmp.ne.s32.totalorder %s27, %s30
      %p39 = scmp.eq.s32.totalorder %s22, 2
      %p40 = por %p38, %p39
      %p41 = scmp.ne.s32.totalorder %s30, %s31
      %p42 = scmp.eq.s32.totalorder %s22, 0
      %p43 = por %p41, %p42
      %p44 = scmp.ne.s32.totalorder %s30, %s31
      %p45 = scmp.eq.s32.totalorder %s23, 2
      %p46 = por %p44, %p45
      %p48 = scmp.ne.s32.totalorder %s31, %s47
      %p49 = scmp.eq.s32.totalorder %s23, 0
      %p50 = por %p48, %p49
      %s52 = sadd.s32 %s51, 1
      %p55 = scmp.eq.s32.totalorder %s17, 2
      %p56 = scmp.ne.s32.totalorder %s51, %s53
      %p57 = scmp.eq.s32.totalorder %s17, 0
      %p58 = por %p56, %p57
      %p59 = scmp.ne.s32.totalorder %s51, %s53
      %p60 = scmp.eq.s32.totalorder %s22, 2
      %p61 = por %p59, %p60
      %p62 = scmp.ne.s32.totalorder %s53, %s54
      %p63 = scmp.eq.s32.totalorder %s22, 0
      %p64 = por %p62, %p63
      %p65 = scmp.ne.s32.totalorder %s53, %s54
      %p66 = scmp.eq.s32.totalorder %s23, 2
      %p67 = por %p65, %p66
      %p69 = scmp.ne.s32.totalorder %s54, %s68
      %p70 = scmp.eq.s32.totalorder %s23, 0
      %p71 = por %p69, %p70
      %s73 = sadd.s32 %s72, 1
      %p76 = scmp.eq.s32.totalorder %s17, 2
      %p77 = scmp.ne.s32.totalorder %s72, %s74
      %p78 = scmp.eq.s32.totalorder %s17, 0
      %p79 = por %p77, %p78
      %p80 = scmp.ne.s32.totalorder %s72, %s74
      %p81 = scmp.eq.s32.totalorder %s22, 2
      %p82 = por %p80, %p81
      %p83 = scmp.ne.s32.totalorder %s74, %s75
      %p84 = scmp.eq.s32.totalorder %s22, 0
      %p85 = por %p83, %p84
      %p86 = scmp.ne.s32.totalorder %s74, %s75
      %p87 = scmp.eq.s32.totalorder %s23, 2
      %p88 = por %p86, %p87
      %p90 = scmp.ne.s32.totalorder %s75, %s89
      %p91 = scmp.eq.s32.totalorder %s23, 0
      %p92 = por %p90, %p91
      %s94 = sadd.s32 %s93, 1
      %p97 = scmp.eq.s32.totalorder %s17, 2
      %p98 = scmp.ne.s32.totalorder %s93, %s95
      %p99 = scmp.eq.s32.totalorder %s17, 0
      %p100 = por %p98, %p99
      %p101 = scmp.ne.s32.totalorder %s93, %s95
      %p102 = scmp.eq.s32.totalorder %s22, 2
      %p103 = por %p101, %p102
      %p104 = scmp.ne.s32.totalorder %s95, %s96
      %p105 = scmp.eq.s32.totalorder %s22, 0
      %p106 = por %p104, %p105
      %p107 = scmp.ne.s32.totalorder %s95, %s96
      %p108 = scmp.eq.s32.totalorder %s23, 2
      %p109 = por %p107, %p108
      %p111 = scmp.ne.s32.totalorder %s96, %s110
      %p112 = scmp.eq.s32.totalorder %s23, 0
      %p113 = por %p111, %p112
      %s115 = sadd.s32 %s114, 1
      %p118 = scmp.eq.s32.totalorder %s17, 2
      %p119 = scmp.ne.s32.totalorder %s114, %s116
      %p120 = scmp.eq.s32.totalorder %s17, 0
      %p121 = por %p119, %p120
      %p122 = scmp.ne.s32.totalorder %s114, %s116
      %p123 = scmp.eq.s32.totalorder %s22, 2
      %p124 = por %p122, %p123
      %p125 = scmp.ne.s32.totalorder %s116, %s117
      %p126 = scmp.eq.s32.totalorder %s22, 0
      %p127 = por %p125, %p126
      %p128 = scmp.ne.s32.totalorder %s116, %s117
      %p129 = scmp.eq.s32.totalorder %s23, 2
      %p130 = por %p128, %p129
      %p132 = scmp.ne.s32.totalorder %s117, %s131
      %p133 = scmp.eq.s32.totalorder %s23, 0
      %p134 = por %p132, %p133
      %s136 = sadd.s32 %s135, 1
      %p139 = scmp.eq.s32.totalorder %s17, 2
      %p140 = scmp.ne.s32.totalorder %s135, %s137
      %p141 = scmp.eq.s32.totalorder %s17, 0
      %p142 = por %p140, %p141
      %p143 = scmp.ne.s32.totalorder %s135, %s137
      %p144 = scmp.eq.s32.totalorder %s22, 2
      %p145 = por %p143, %p144
      %p146 = scmp.ne.s32.totalorder %s137, %s138
      %p147 = scmp.eq.s32.totalorder %s22, 0
      %p148 = por %p146, %p147
      %p149 = scmp.ne.s32.totalorder %s137, %s138
      %p150 = scmp.eq.s32.totalorder %s23, 2
      %p151 = por %p149, %p150
      %p153 = scmp.ne.s32.totalorder %s138, %s152
      %p154 = scmp.eq.s32.totalorder %s23, 0
      %p155 = por %p153, %p154
      %s157 = sadd.s32 %s156, 1
      %p160 = scmp.eq.s32.totalorder %s17, 2
      %p161 = scmp.ne.s32.totalorder %s156, %s158
      %p162 = scmp.eq.s32.totalorder %s17, 0
      %p163 = por %p161, %p162
      %p164 = scmp.ne.s32.totalorder %s156, %s158
      %p165 = scmp.eq.s32.totalorder %s22, 2
      %p166 = por %p164, %p165
      %p167 = scmp.ne.s32.totalorder %s158, %s159
      %p168 = scmp.eq.s32.totalorder %s22, 0
      %p169 = por %p167, %p168
      %p170 = scmp.ne.s32.totalorder %s158, %s159
      %p171 = scmp.eq.s32.totalorder %s23, 2
      %p172 = por %p170, %p171
      %p174 = scmp.ne.s32.totalorder %s159, %s173
      %p175 = scmp.eq.s32.totalorder %s23, 0
      %p176 = por %p174, %p175
      %s178 = sadd.s32 %s177, 1
      %p181 = scmp.eq.s32.totalorder %s17, 2
      %p182 = scmp.ne.s32.totalorder %s177, %s179
      %p183 = scmp.eq.s32.totalorder %s17, 0
      %p184 = por %p182, %p183
      %p185 = scmp.ne.s32.totalorder %s177, %s179
      %p186 = scmp.eq.s32.totalorder %s22, 2
      %p187 = por %p185, %p186
      %p188 = scmp.ne.s32.totalorder %s179, %s180
      %p189 = scmp.eq.s32.totalorder %s22, 0
      %p190 = por %p188, %p189
      %p191 = scmp.ne.s32.totalorder %s179, %s180
      %p192 = scmp.eq.s32.totalorder %s23, 2
      %p193 = por %p191, %p192
      %p195 = scmp.ne.s32.totalorder %s180, %s194
      %p196 = scmp.eq.s32.totalorder %s23, 0
      %p197 = por %p195, %p196
      %s198 = ssub.s32 %s17, %s24
      %p199 = scmp.eq.s32.totalorder %s198, 0
      %s201 = sadd.s32 %s200, 1
      %s202 = scalar_select %p199, %s200, %s201
      %p205 = pneg %p199
      %p206 = scmp.eq.s32.totalorder %s17, 2
      %p207 = por %p205, %p206
      %p208 = scmp.ne.s32.totalorder %s200, %s203
      %p209 = scmp.eq.s32.totalorder %s17, 0
      %p210 = por %p208, %p209
      %p211 = scmp.ne.s32.totalorder %s200, %s203
      %p212 = scmp.eq.s32.totalorder %s22, 2
      %p213 = por %p211, %p212
      %p214 = scmp.ne.s32.totalorder %s203, %s204
      %p215 = scmp.eq.s32.totalorder %s22, 0
      %p216 = por %p214, %p215
      %p217 = scmp.ne.s32.totalorder %s203, %s204
      %p218 = scmp.eq.s32.totalorder %s23, 2
      %p219 = por %p217, %p218
      %p221 = scmp.ne.s32.totalorder %s204, %s220
      %p222 = scmp.eq.s32.totalorder %s23, 0
      %p223 = por %p221, %p222
      %p224 = scmp.le.s32.totalorder 1, %s17
      %p225 = scmp.lt.s32.totalorder %s17, 4
      %p226 = pnand %p224, %p225
      %p227 = pneg %p226
      // Predicated region
      $region9: #{tpu_custom_call.1} parent=5 // pred_check
        _
      $region10: #{tpu_custom_call.1} parent=5 // pred_check_branch
        %229 = sbr.rel (%p226) target = $region12
      $region11: #{tpu_custom_call.1} parent=5 // pred_region
        %s230 = ssub.s32 %s17, 1
        // Predicated region
        $region13: #{tpu_custom_call.1} parent=11 // pred_check
          %p231 = pneg %p64
        $region14: #{tpu_custom_call.1} parent=11 // pred_check_branch
          %233 = sbr.rel (%p231) target = $region16
        $region15: #{tpu_custom_call.1} parent=11 // pred_region
          _
        $region16: #{tpu_custom_call.1} parent=11 // pred_fallthru
          _
        // Predicated region
        $region17: #{tpu_custom_call.1} parent=11 // pred_check
          %p234 = pneg %p85
        $region18: #{tpu_custom_call.1} parent=11 // pred_check_branch
          %236 = sbr.rel (%p234) target = $region20
        $region19: #{tpu_custom_call.1} parent=11 // pred_region
          _
        $region20: #{tpu_custom_call.1} parent=11 // pred_fallthru
          _
        // Predicated region
        $region21: #{tpu_custom_call.1} parent=11 // pred_check
          %p237 = pneg %p106
        $region22: #{tpu_custom_call.1} parent=11 // pred_check_branch
          %239 = sbr.rel (%p237) target = $region24
        $region23: #{tpu_custom_call.1} parent=11 // pred_region
          _
        $region24: #{tpu_custom_call.1} parent=11 // pred_fallthru
          _
        // Predicated region
        $region25: #{tpu_custom_call.1} parent=11 // pred_check
          %p240 = pneg %p127
        $region26: #{tpu_custom_call.1} parent=11 // pred_check_branch
          %242 = sbr.rel (%p240) target = $region28
        $region27: #{tpu_custom_call.1} parent=11 // pred_region
          _
        $region28: #{tpu_custom_call.1} parent=11 // pred_fallthru
          _
        // Predicated region
        $region29: #{tpu_custom_call.1} parent=11 // pred_check
          %p243 = pneg %p148
        $region30: #{tpu_custom_call.1} parent=11 // pred_check_branch
          %245 = sbr.rel (%p243) target = $region32
        $region31: #{tpu_custom_call.1} parent=11 // pred_region
          _
        $region32: #{tpu_custom_call.1} parent=11 // pred_fallthru
          _
        // Predicated region
        $region33: #{tpu_custom_call.1} parent=11 // pred_check
          %p246 = pneg %p169
        $region34: #{tpu_custom_call.1} parent=11 // pred_check_branch
          %248 = sbr.rel (%p246) target = $region36
        $region35: #{tpu_custom_call.1} parent=11 // pred_region
          _
        $region36: #{tpu_custom_call.1} parent=11 // pred_fallthru
          _
        // Predicated region
        $region37: #{tpu_custom_call.1} parent=11 // pred_check
          %p249 = pneg %p190
        $region38: #{tpu_custom_call.1} parent=11 // pred_check_branch
          %251 = sbr.rel (%p249) target = $region40
        $region39: #{tpu_custom_call.1} parent=11 // pred_region
          _
        $region40: #{tpu_custom_call.1} parent=11 // pred_fallthru
          _
      $region12: #{tpu_custom_call.1} parent=5 // pred_fallthru
        _
      %p252 = scmp.lt.s32.totalorder %s17, 3
      // Predicated region
      $region41: #{tpu_custom_call.1} parent=5 // pred_check
        %p253 = pneg %p252
      $region42: #{tpu_custom_call.1} parent=5 // pred_check_branch
        %255 = sbr.rel (%p253) target = $region44
      $region43: #{tpu_custom_call.1} parent=5 // pred_region
        // Predicated region
        $region45: #{tpu_custom_call.1} parent=43 // pred_check
          %p256 = pneg %p37
        $region46: #{tpu_custom_call.1} parent=43 // pred_check_branch
          %258 = sbr.rel (%p256) target = $region48
        $region47: #{tpu_custom_call.1} parent=43 // pred_region
          %p259 = scmp.lt.s32.totalorder %s17, 2
          %s260 = scalar_select %p259, %s17, 2
          %s261 = smul.addr %s260, 3
          %s262 = smul.addr %s261, 4
          %s263 = scalar_lea.vmem %s0, %s262
        $region48: #{tpu_custom_call.1} parent=43 // pred_fallthru
          _
      $region44: #{tpu_custom_call.1} parent=5 // pred_fallthru
        _
      %p264 = scmp.le.s32.totalorder 1, %s17
      %p265 = scmp.lt.s32.totalorder %s17, 4
      %p266 = pnand %p264, %p265
      %p267 = pneg %p266
      // Predicated region
      $region49: #{tpu_custom_call.1} parent=5 // pred_check
        _
      $region50: #{tpu_custom_call.1} parent=5 // pred_check_branch
        %269 = sbr.rel (%p266) target = $region52
      $region51: #{tpu_custom_call.1} parent=5 // pred_region
        %s270 = ssub.s32 %s17, 1
        %p271 = scmp.lt.s32.totalorder %s22, 2
        %s272 = scalar_select %p271, %s22, 2
        %s273 = smul.addr %s272, 3
        %s274 = smul.addr %s273, 4
        %s275 = scalar_lea.vmem %s0, %s274
        %p276 = pneg %p43
        %p277 = pneg %p40
        %p278 = pneg %p64
        %p279 = pneg %p61
        %p280 = pneg %p85
        %p281 = pneg %p82
        %p282 = pneg %p106
        %p283 = pneg %p103
        %p284 = pneg %p127
        %p285 = pneg %p124
        %p286 = pneg %p148
        %p287 = pneg %p145
        %p288 = pneg %p169
        %p289 = pneg %p166
        %p290 = pneg %p190
        %p291 = pneg %p187
        %p292 = pneg %p216
        %p293 = pneg %p213
        %s294 = sand.u32 %s203, 1
        %s295 = scalar_lea.sflag [#allocation4], %s294
        %s296 = sand.u32 %s203, 1
        %s297 = smul.addr %s296, 2
        %s298 = scalar_lea.vmem [#allocation3], %s297
        %p299 = scmp.lt.s32.totalorder %s22, 2
        %s300 = scalar_select %p299, %s22, 2
        %s301 = smul.addr %s300, 3
        %s302 = smul.addr %s301, 4
        %s303 = scalar_lea.vmem %s0, %s302
        %v305 = vld [vmem:[%s303] sm:$0xf]
        %v306 = vld [vmem:[%s303 + $0x4] sm:$0xf]
        %v307 = vld [vmem:[%s303 + $0x8] sm:$0x3]
        %v308 = vld [vmem:[%s1] sm:$0xf]
        %v309 = vld [vmem:[%s1 + $0x4] sm:$0xf]
        %s310 = scalar_lea.vmem %s1, 8
        %v311 = vld [vmem:[%s310] sm:$0xf]
        %v312 = vld [vmem:[%s310 + $0x4] sm:$0xf]
        %v316 = vunpack.c.l.b16 %v305
        %v317 = vunpack.c.l.b16 %v306
        %v318 = vunpack.c.l.b16 %v307
        %v319 = vpack.c.b16 %v317, %v316
        %v320 = vpack.c.b16 %v318, %v318
        %vm321 = vcmask 1046528
        %v322 = vrot.slane %v319, 1
        %v323 = vrot.slane %v320, 1
        %v324 = vsel %vm321, %v322, %v323
        %v327 = vunpack.c.l.b16 %v311
        %v328 = vunpack.c.l.b16 %v312
        %v329 = vpack.c.b16 %v328, %v327
        %vm331 = vcmask 130048
        %v333 = vsel %vm331, %v324, 0
        %v336 = vsel %vm331, %v323, 0
        %338 = vmatprep.subr.bf16.mxu0 0
        %339 = vmatpush1.bf16.msra.mxu0 %v329
        %340 = vmatprep.subr.bf16.mxu0 0
        %341 = vmatpush1.bf16.msra.mxu0 0
        %342 = vmatprep.subr.bf16.mxu0 0
        %343 = vmatpush1.bf16.msra.mxu0 0
        %344 = vmatprep.subr.bf16.mxu0 0
        %345 = vmatpush1.bf16.msra.mxu0 0
        %346 = vmatprep.subr.bf16.mxu0 0
        %347 = vmatpush1.bf16.msra.mxu0 0
        %348 = vmatprep.subr.bf16.mxu0 0
        %349 = vmatpush1.bf16.msra.mxu0 0
        %350 = vmatprep.subr.bf16.mxu0 0
        %351 = vmatpush1.bf16.msra.mxu0 0
        %352 = vmatprep.subr.bf16.mxu0 0
        %353 = vmatpush1.bf16.msra.mxu0 0
        %354 = vmatprep.subr.bf16.mxu0 0
        %355 = vmatpush1.bf16.msra.mxu0 0
        %356 = vmatprep.subr.bf16.mxu0 0
        %357 = vmatpush1.bf16.msra.mxu0 0
        %358 = vmatprep.subr.bf16.mxu0 0
        %359 = vmatpush1.bf16.msra.mxu0 0
        %360 = vmatprep.subr.bf16.mxu0 0
        %361 = vmatpush1.bf16.msra.mxu0 0
        %362 = vmatprep.subr.bf16.mxu0 0
        %363 = vmatpush1.bf16.msra.mxu0 0
        %364 = vmatprep.subr.bf16.mxu0 0
        %365 = vmatpush1.bf16.msra.mxu0 0
        %366 = vmatprep.subr.bf16.mxu0 0
        %367 = vmatpush1.bf16.msra.mxu0 0
        %368 = vmatprep.subr.bf16.mxu0 0
        %369 = vmatpush1.bf16.msra.mxu0 0
        %370 = vmatprep.mubr.bf16.mxu0 0
        %371 = vmatmul.mubr.bf16.gmra.mrb[0].mxu0 %v333
        %v372 = vpop.f32.mrb[0].mxu0
        %v373 = vadd.f32 0.0, %v372
        %v374 = vpop.f32.mrb[0].mxu0
        %v375 = vpop.f32.mrb[0].mxu0
        %v376 = vadd.f32 0.0, %v375
        %v377 = vpop.f32.mrb[0].mxu0
        %378 = vmatprep.mubr.bf16.mxu0 0
        %379 = vmatmul.mubr.bf16.gmra.mrb[0].mxu0 %v336
        %v380 = vpop.f32.mrb[0].mxu0
        %v381 = vadd.f32 0.0, %v380
        %v382 = vpop.f32.mrb[0].mxu0
        %v383 = vpop.f32.mrb[0].mxu0
        %v384 = vpop.f32.mrb[0].mxu0
        %385 = vdwg.mxu0
        %v388 = vunpack.c.l.b16 %v308
        %v389 = vunpack.c.l.b16 %v309
        %v390 = vpack.c.b16 %v389, %v388
        %v393 = vsel %vm331, %v319, 0
        %v396 = vsel %vm331, %v320, 0
        %398 = vmatprep.subr.bf16.mxu0 0
        %399 = vmatpush1.bf16.msra.mxu0 %v390
        %400 = vmatprep.subr.bf16.mxu0 0
        %401 = vmatpush1.bf16.msra.mxu0 0
        %402 = vmatprep.subr.bf16.mxu0 0
        %403 = vmatpush1.bf16.msra.mxu0 0
        %404 = vmatprep.subr.bf16.mxu0 0
        %405 = vmatpush1.bf16.msra.mxu0 0
        %406 = vmatprep.subr.bf16.mxu0 0
        %407 = vmatpush1.bf16.msra.mxu0 0
        %408 = vmatprep.subr.bf16.mxu0 0
        %409 = vmatpush1.bf16.msra.mxu0 0
        %410 = vmatprep.subr.bf16.mxu0 0
        %411 = vmatpush1.bf16.msra.mxu0 0
        %412 = vmatprep.subr.bf16.mxu0 0
        %413 = vmatpush1.bf16.msra.mxu0 0
        %414 = vmatprep.subr.bf16.mxu0 0
        %415 = vmatpush1.bf16.msra.mxu0 0
        %416 = vmatprep.subr.bf16.mxu0 0
        %417 = vmatpush1.bf16.msra.mxu0 0
        %418 = vmatprep.subr.bf16.mxu0 0
        %419 = vmatpush1.bf16.msra.mxu0 0
        %420 = vmatprep.subr.bf16.mxu0 0
        %421 = vmatpush1.bf16.msra.mxu0 0
        %422 = vmatprep.subr.bf16.mxu0 0
        %423 = vmatpush1.bf16.msra.mxu0 0
        %424 = vmatprep.subr.bf16.mxu0 0
        %425 = vmatpush1.bf16.msra.mxu0 0
        %426 = vmatprep.subr.bf16.mxu0 0
        %427 = vmatpush1.bf16.msra.mxu0 0
        %428 = vmatprep.subr.bf16.mxu0 0
        %429 = vmatpush1.bf16.msra.mxu0 0
        %430 = vmatprep.mubr.bf16.mxu0 0
        %431 = vmatmul.mubr.bf16.gmra.mrb[0].mxu0 %v393
        %v432 = vpop.f32.mrb[0].mxu0
        %v433 = vadd.f32 %v373, %v432
        %v434 = vpop.f32.mrb[0].mxu0
        %v435 = vpop.f32.mrb[0].mxu0
        %v436 = vadd.f32 %v376, %v435
        %v437 = vpop.f32.mrb[0].mxu0
        %438 = vmatprep.mubr.bf16.mxu0 0
        %439 = vmatmul.mubr.bf16.gmra.mrb[0].mxu0 %v396
        %v440 = vpop.f32.mrb[0].mxu0
        %v441 = vadd.f32 %v381, %v440
        %v442 = vpop.f32.mrb[0].mxu0
        %v443 = vpop.f32.mrb[0].mxu0
        %v444 = vpop.f32.mrb[0].mxu0
        %445 = vdwg.mxu0
        %v447 = vrot.slane %v433, 2
        %v449 = vmax.f32 %v433, %v447
        %v450 = vrot.slane %v433, 4
        %v452 = vmax.f32 %v449, %v450
        %v453 = vrot.slane %v433, 6
        %v455 = vmax.f32 %v452, %v453
        %v456 = vmax.f32 %v455, %v436
        %v458 = vrot.slane %v436, 2
        %v460 = vmax.f32 %v456, %v458
        %v461 = vrot.slane %v436, 4
        %v463 = vmax.f32 %v460, %v461
        %v464 = vrot.slane %v436, 6
        %v466 = vmax.f32 %v463, %v464
        %v467 = vmax.f32 %v466, %v441
        %v468 = vld [vmem:[%s3] sm:$0x1]
        %v470 = vlaneseq
        %v471 = vshrl.u32 %v470, 7
        %v472 = vsub.s32 0, %v471
        %v473 = vrot.slane %v468, %v472
        %v475 = vadd.f32 %v467, %v473
        %v476 = vmax.f32 %v475, 0.0
        %vm477 = vcmask 58368
        %478 = vst.msk [vmem:[%s298] sm:$0x3] %vm477, %v476
        %v479 = vld [vmem:[%s2] sm:$0xf]
        %v480 = vld [vmem:[%s2 + $0x4] sm:$0xf]
        %s481 = scalar_lea.vmem %s2, 8
        %v482 = vld [vmem:[%s481] sm:$0xf]
        %v483 = vld [vmem:[%s481 + $0x4] sm:$0xf]
        %v486 = vunpack.c.l.b16 %v482
        %v487 = vunpack.c.l.b16 %v483
        %v488 = vpack.c.b16 %v487, %v486
        %490 = vmatprep.subr.bf16.mxu0 0
        %491 = vmatpush1.bf16.msra.mxu0 %v488
        %492 = vmatprep.subr.bf16.mxu0 0
        %493 = vmatpush1.bf16.msra.mxu0 0
        %494 = vmatprep.subr.bf16.mxu0 0
        %495 = vmatpush1.bf16.msra.mxu0 0
        %496 = vmatprep.subr.bf16.mxu0 0
        %497 = vmatpush1.bf16.msra.mxu0 0
        %498 = vmatprep.subr.bf16.mxu0 0
        %499 = vmatpush1.bf16.msra.mxu0 0
        %500 = vmatprep.subr.bf16.mxu0 0
        %501 = vmatpush1.bf16.msra.mxu0 0
        %502 = vmatprep.subr.bf16.mxu0 0
        %503 = vmatpush1.bf16.msra.mxu0 0
        %504 = vmatprep.subr.bf16.mxu0 0
        %505 = vmatpush1.bf16.msra.mxu0 0
        %506 = vmatprep.subr.bf16.mxu0 0
        %507 = vmatpush1.bf16.msra.mxu0 0
        %508 = vmatprep.subr.bf16.mxu0 0
        %509 = vmatpush1.bf16.msra.mxu0 0
        %510 = vmatprep.subr.bf16.mxu0 0
        %511 = vmatpush1.bf16.msra.mxu0 0
        %512 = vmatprep.subr.bf16.mxu0 0
        %513 = vmatpush1.bf16.msra.mxu0 0
        %514 = vmatprep.subr.bf16.mxu0 0
        %515 = vmatpush1.bf16.msra.mxu0 0
        %516 = vmatprep.subr.bf16.mxu0 0
        %517 = vmatpush1.bf16.msra.mxu0 0
        %518 = vmatprep.subr.bf16.mxu0 0
        %519 = vmatpush1.bf16.msra.mxu0 0
        %520 = vmatprep.subr.bf16.mxu0 0
        %521 = vmatpush1.bf16.msra.mxu0 0
        %522 = vmatprep.mubr.bf16.mxu0 0
        %523 = vmatmul.mubr.bf16.gmra.mrb[0].mxu0 %v333
        %v524 = vpop.f32.mrb[0].mxu0
        %v525 = vadd.f32 0.0, %v524
        %v526 = vpop.f32.mrb[0].mxu0
        %v527 = vpop.f32.mrb[0].mxu0
        %v528 = vadd.f32 0.0, %v527
        %v529 = vpop.f32.mrb[0].mxu0
        %530 = vdwg.mxu0
        %v533 = vunpack.c.l.b16 %v479
        %v534 = vunpack.c.l.b16 %v480
        %v535 = vpack.c.b16 %v534, %v533
        %537 = vmatprep.subr.bf16.mxu0 0
        %538 = vmatpush1.bf16.msra.mxu0 %v535
        %539 = vmatprep.subr.bf16.mxu0 0
        %540 = vmatpush1.bf16.msra.mxu0 0
        %541 = vmatprep.subr.bf16.mxu0 0
        %542 = vmatpush1.bf16.msra.mxu0 0
        %543 = vmatprep.subr.bf16.mxu0 0
        %544 = vmatpush1.bf16.msra.mxu0 0
        %545 = vmatprep.subr.bf16.mxu0 0
        %546 = vmatpush1.bf16.msra.mxu0 0
        %547 = vmatprep.subr.bf16.mxu0 0
        %548 = vmatpush1.bf16.msra.mxu0 0
        %549 = vmatprep.subr.bf16.mxu0 0
        %550 = vmatpush1.bf16.msra.mxu0 0
        %551 = vmatprep.subr.bf16.mxu0 0
        %552 = vmatpush1.bf16.msra.mxu0 0
        %553 = vmatprep.subr.bf16.mxu0 0
        %554 = vmatpush1.bf16.msra.mxu0 0
        %555 = vmatprep.subr.bf16.mxu0 0
        %556 = vmatpush1.bf16.msra.mxu0 0
        %557 = vmatprep.subr.bf16.mxu0 0
        %558 = vmatpush1.bf16.msra.mxu0 0
        %559 = vmatprep.subr.bf16.mxu0 0
        %560 = vmatpush1.bf16.msra.mxu0 0
        %561 = vmatprep.subr.bf16.mxu0 0
        %562 = vmatpush1.bf16.msra.mxu0 0
        %563 = vmatprep.subr.bf16.mxu0 0
        %564 = vmatpush1.bf16.msra.mxu0 0
        %565 = vmatprep.subr.bf16.mxu0 0
        %566 = vmatpush1.bf16.msra.mxu0 0
        %567 = vmatprep.subr.bf16.mxu0 0
        %568 = vmatpush1.bf16.msra.mxu0 0
        %569 = vmatprep.mubr.bf16.mxu0 0
        %570 = vmatmul.mubr.bf16.gmra.mrb[0].mxu0 %v393
        %v571 = vpop.f32.mrb[0].mxu0
        %v572 = vadd.f32 %v525, %v571
        %v573 = vpop.f32.mrb[0].mxu0
        %v574 = vpop.f32.mrb[0].mxu0
        %v575 = vadd.f32 %v528, %v574
        %v576 = vpop.f32.mrb[0].mxu0
        %577 = vdwg.mxu0
        %s578 = scalar_lea.vmem %s2, 16
        %v579 = vld [vmem:[%s578] sm:$0xf]
        %v580 = vld [vmem:[%s578 + $0x4] sm:$0xf]
        %vm581 = vcmask 1045504
        %v582 = vrot.slane %v319, 2
        %v583 = vrot.slane %v320, 2
        %v584 = vsel %vm581, %v582, %v583
        %v587 = vunpack.c.l.b16 %v579
        %v588 = vunpack.c.l.b16 %v580
        %v589 = vpack.c.b16 %v588, %v587
        %v592 = vsel %vm331, %v584, 0
        %594 = vmatprep.subr.bf16.mxu0 0
        %595 = vmatpush1.bf16.msra.mxu0 %v589
        %596 = vmatprep.subr.bf16.mxu0 0
        %597 = vmatpush1.bf16.msra.mxu0 0
        %598 = vmatprep.subr.bf16.mxu0 0
        %599 = vmatpush1.bf16.msra.mxu0 0
        %600 = vmatprep.subr.bf16.mxu0 0
        %601 = vmatpush1.bf16.msra.mxu0 0
        %602 = vmatprep.subr.bf16.mxu0 0
        %603 = vmatpush1.bf16.msra.mxu0 0
        %604 = vmatprep.subr.bf16.mxu0 0
        %605 = vmatpush1.bf16.msra.mxu0 0
        %606 = vmatprep.subr.bf16.mxu0 0
        %607 = vmatpush1.bf16.msra.mxu0 0
        %608 = vmatprep.subr.bf16.mxu0 0
        %609 = vmatpush1.bf16.msra.mxu0 0
        %610 = vmatprep.subr.bf16.mxu0 0
        %611 = vmatpush1.bf16.msra.mxu0 0
        %612 = vmatprep.subr.bf16.mxu0 0
        %613 = vmatpush1.bf16.msra.mxu0 0
        %614 = vmatprep.subr.bf16.mxu0 0
        %615 = vmatpush1.bf16.msra.mxu0 0
        %616 = vmatprep.subr.bf16.mxu0 0
        %617 = vmatpush1.bf16.msra.mxu0 0
        %618 = vmatprep.subr.bf16.mxu0 0
        %619 = vmatpush1.bf16.msra.mxu0 0
        %620 = vmatprep.subr.bf16.mxu0 0
        %621 = vmatpush1.bf16.msra.mxu0 0
        %622 = vmatprep.subr.bf16.mxu0 0
        %623 = vmatpush1.bf16.msra.mxu0 0
        %624 = vmatprep.subr.bf16.mxu0 0
        %625 = vmatpush1.bf16.msra.mxu0 0
        %626 = vmatprep.mubr.bf16.mxu0 0
        %627 = vmatmul.mubr.bf16.gmra.mrb[0].mxu0 %v592
        %v628 = vpop.f32.mrb[0].mxu0
        %v629 = vadd.f32 0.0, %v628
        %v630 = vpop.f32.mrb[0].mxu0
        %v631 = vpop.f32.mrb[0].mxu0
        %v632 = vadd.f32 0.0, %v631
        %v633 = vpop.f32.mrb[0].mxu0
        %634 = vdwg.mxu0
        %v635 = vadd.f32 %v572, %v629
        %v636 = vadd.f32 %v575, %v632
        %v638 = vrot.slane %v635, 2
        %v640 = vmax.f32 %v635, %v638
        %v641 = vrot.slane %v635, 4
        %v643 = vmax.f32 %v640, %v641
        %v644 = vrot.slane %v635, 6
        %v646 = vmax.f32 %v643, %v644
        %v647 = vmax.f32 %v646, %v636
        %v649 = vrot.slane %v636, 2
        %v651 = vmax.f32 %v647, %v649
        %v652 = vrot.slane %v636, 4
        %v654 = vmax.f32 %v651, %v652
        %v655 = vrot.slane %v636, 6
        %v657 = vmax.f32 %v654, %v655
        %s658 = scalar_lea.vmem %s3, 1
        %v659 = vld [vmem:[%s658] sm:$0x1]
        %v661 = vlaneseq
        %v662 = vshrl.u32 %v661, 7
        %v663 = vsub.s32 0, %v662
        %v664 = vrot.slane %v659, %v663
        %v666 = vadd.f32 %v657, %v664
        %v667 = vmax.f32 %v666, 0.0
        %669 = vrot.lane.b32.xlu0 %v667, 8
        %v670 = vpop.permute.xlu0 %669
        %vm672 = vcmask 123968
        %673 = vst.msk [vmem:[%s298] sm:$0x3] %vm672, %v670
        %v674 = vld [vmem:[%s4] sm:$0xf]
        %v675 = vld [vmem:[%s4 + $0x4] sm:$0xf]
        %v676 = vld [vmem:[%s6] sm:$0x1]
        %v678 = vlaneseq
        %v679 = vshrl.u32 %v678, 7
        %v680 = vsub.s32 0, %v679
        %v681 = vrot.slane %v676, %v680
        %v685 = vunpack.c.l.b16 %v674
        %v686 = vunpack.c.l.b16 %v675
        %v687 = vpack.c.b16 %v686, %v685
        %689 = vmatprep.subr.bf16.mxu0 0
        %690 = vmatpush1.bf16.msra.mxu0 %v687
        %691 = vmatprep.subr.bf16.mxu0 0
        %692 = vmatpush1.bf16.msra.mxu0 0
        %693 = vmatprep.subr.bf16.mxu0 0
        %694 = vmatpush1.bf16.msra.mxu0 0
        %695 = vmatprep.subr.bf16.mxu0 0
        %696 = vmatpush1.bf16.msra.mxu0 0
        %697 = vmatprep.subr.bf16.mxu0 0
        %698 = vmatpush1.bf16.msra.mxu0 0
        %699 = vmatprep.subr.bf16.mxu0 0
        %700 = vmatpush1.bf16.msra.mxu0 0
        %701 = vmatprep.subr.bf16.mxu0 0
        %702 = vmatpush1.bf16.msra.mxu0 0
        %703 = vmatprep.subr.bf16.mxu0 0
        %704 = vmatpush1.bf16.msra.mxu0 0
        %705 = vmatprep.subr.bf16.mxu0 0
        %706 = vmatpush1.bf16.msra.mxu0 0
        %707 = vmatprep.subr.bf16.mxu0 0
        %708 = vmatpush1.bf16.msra.mxu0 0
        %709 = vmatprep.subr.bf16.mxu0 0
        %710 = vmatpush1.bf16.msra.mxu0 0
        %711 = vmatprep.subr.bf16.mxu0 0
        %712 = vmatpush1.bf16.msra.mxu0 0
        %713 = vmatprep.subr.bf16.mxu0 0
        %714 = vmatpush1.bf16.msra.mxu0 0
        %715 = vmatprep.subr.bf16.mxu0 0
        %716 = vmatpush1.bf16.msra.mxu0 0
        %717 = vmatprep.subr.bf16.mxu0 0
        %718 = vmatpush1.bf16.msra.mxu0 0
        %719 = vmatprep.subr.bf16.mxu0 0
        %720 = vmatpush1.bf16.msra.mxu0 0
        %721 = vmatprep.mubr.bf16.mxu0 0
        %722 = vmatmul.mubr.bf16.gmra.mrb[0].mxu0 %v393
        %v723 = vpop.f32.mrb[0].mxu0
        %v724 = vadd.f32 %v681, %v723
        %v725 = vpop.f32.mrb[0].mxu0
        %v726 = vpop.f32.mrb[0].mxu0
        %v727 = vadd.f32 %v681, %v726
        %v728 = vpop.f32.mrb[0].mxu0
        %729 = vmatprep.mubr.bf16.mxu0 0
        %730 = vmatmul.mubr.bf16.gmra.mrb[0].mxu0 %v396
        %v731 = vpop.f32.mrb[0].mxu0
        %v732 = vadd.f32 %v681, %v731
        %v733 = vpop.f32.mrb[0].mxu0
        %v734 = vpop.f32.mrb[0].mxu0
        %v735 = vpop.f32.mrb[0].mxu0
        %736 = vdwg.mxu0
        %vm737 = vcmask 392192
        %738 = vst.msk [vmem:[#allocation2] sm:$0xff] %vm737, %v724
        %739 = vst.msk [vmem:[#allocation2 + $0x8] sm:$0xff] %vm737, %v727
        %vm740 = vcmask 388096
        %741 = vst.msk [vmem:[#allocation2 + $0x10] sm:$0xf] %vm740, %v732
        %v742 = vld [vmem:[#allocation2] sm:$0x3]
        %v743 = vld [vmem:[%s5] sm:$0xf]
        %v744 = vld [vmem:[%s5 + $0x4] sm:$0xf]
        %v745 = vld [vmem:[%s7] sm:$0x1]
        %v747 = vlaneseq
        %v748 = vshrl.u32 %v747, 7
        %v749 = vsub.s32 0, %v748
        %v750 = vrot.slane %v745, %v749
        %v754 = vunpack.c.l.b16 %v743
        %v755 = vunpack.c.l.b16 %v744
        %v756 = vpack.c.b16 %v755, %v754
        %v759 = vsel %vm331, 0, 0
        %761 = vmatprep.subr.bf16.mxu0 0
        %762 = vmatpush1.bf16.msra.mxu0 %v756
        %763 = vmatprep.subr.bf16.mxu0 0
        %764 = vmatpush1.bf16.msra.mxu0 0
        %765 = vmatprep.subr.bf16.mxu0 0
        %766 = vmatpush1.bf16.msra.mxu0 0
        %767 = vmatprep.subr.bf16.mxu0 0
        %768 = vmatpush1.bf16.msra.mxu0 0
        %769 = vmatprep.subr.bf16.mxu0 0
        %770 = vmatpush1.bf16.msra.mxu0 0
        %771 = vmatprep.subr.bf16.mxu0 0
        %772 = vmatpush1.bf16.msra.mxu0 0
        %773 = vmatprep.subr.bf16.mxu0 0
        %774 = vmatpush1.bf16.msra.mxu0 0
        %775 = vmatprep.subr.bf16.mxu0 0
        %776 = vmatpush1.bf16.msra.mxu0 0
        %777 = vmatprep.subr.bf16.mxu0 0
        %778 = vmatpush1.bf16.msra.mxu0 0
        %779 = vmatprep.subr.bf16.mxu0 0
        %780 = vmatpush1.bf16.msra.mxu0 0
        %781 = vmatprep.subr.bf16.mxu0 0
        %782 = vmatpush1.bf16.msra.mxu0 0
        %783 = vmatprep.subr.bf16.mxu0 0
        %784 = vmatpush1.bf16.msra.mxu0 0
        %785 = vmatprep.subr.bf16.mxu0 0
        %786 = vmatpush1.bf16.msra.mxu0 0
        %787 = vmatprep.subr.bf16.mxu0 0
        %788 = vmatpush1.bf16.msra.mxu0 0
        %789 = vmatprep.subr.bf16.mxu0 0
        %790 = vmatpush1.bf16.msra.mxu0 0
        %791 = vmatprep.subr.bf16.mxu0 0
        %792 = vmatpush1.bf16.msra.mxu0 0
        %793 = vmatprep.mubr.bf16.mxu0 0
        %794 = vmatmul.mubr.bf16.gmra.mrb[0].mxu0 %v759
        %v795 = vpop.f32.mrb[0].mxu0
        %v796 = vadd.f32 %v750, %v795
        %v797 = vpop.f32.mrb[0].mxu0
        %v798 = vpop.f32.mrb[0].mxu0
        %v799 = vpop.f32.mrb[0].mxu0
        %800 = vdwg.mxu0
        %v801 = vadd.f32 %v742, %v796
        %v802 = vxor.u32 %v801, 2147483648
        %v803 = vmul.f32 %v802, 1.442695
        %v804 = vpow.pop %v803
        %v805 = vadd.f32 %v804, 1.0
        %v806 = vrcp.pop %v805
        %v807 = vmul.f32 1.0, %v806
        %809 = vrot.lane.b32.xlu0 %v796, 96
        %v810 = vpop.permute.xlu0 %809
        %v812 = vmul.f32 %v807, %v810
        %814 = vrot.lane.b32.xlu0 %v812, 32
        %v815 = vpop.permute.xlu0 %814
        %v817 = vadd.f32 %v742, %v815
        %v818 = vtanh.pop %v817
        %v819 = vsub.f32 1.0, %v807
        %821 = vrot.lane.b32.xlu0 %v818, 112
        %v822 = vpop.permute.xlu0 %821
        %v824 = vmul.f32 %v819, %v822
        %v825 = vmul.f32 %v807, 0.0
        %v826 = vadd.f32 %v824, %v825
        %v827 = vld [vmem:[#allocation2 + $0x2] sm:$0x3]
        %v828 = vpack.c.bf16 %v826, %v826
        %830 = vrot.lane.b32.xlu0 %v828, 112
        %v831 = vpop.permute.xlu0 %830
        %v833 = vsel %vm331, %v831, 0
        %835 = vmatprep.subr.bf16.mxu0 0
        %836 = vmatpush1.bf16.msra.mxu0 %v756
        %837 = vmatprep.subr.bf16.mxu0 0
        %838 = vmatpush1.bf16.msra.mxu0 0
        %839 = vmatprep.subr.bf16.mxu0 0
        %840 = vmatpush1.bf16.msra.mxu0 0
        %841 = vmatprep.subr.bf16.mxu0 0
        %842 = vmatpush1.bf16.msra.mxu0 0
        %843 = vmatprep.subr.bf16.mxu0 0
        %844 = vmatpush1.bf16.msra.mxu0 0
        %845 = vmatprep.subr.bf16.mxu0 0
        %846 = vmatpush1.bf16.msra.mxu0 0
        %847 = vmatprep.subr.bf16.mxu0 0
        %848 = vmatpush1.bf16.msra.mxu0 0
        %849 = vmatprep.subr.bf16.mxu0 0
        %850 = vmatpush1.bf16.msra.mxu0 0
        %851 = vmatprep.subr.bf16.mxu0 0
        %852 = vmatpush1.bf16.msra.mxu0 0
        %853 = vmatprep.subr.bf16.mxu0 0
        %854 = vmatpush1.bf16.msra.mxu0 0
        %855 = vmatprep.subr.bf16.mxu0 0
        %856 = vmatpush1.bf16.msra.mxu0 0
        %857 = vmatprep.subr.bf16.mxu0 0
        %858 = vmatpush1.bf16.msra.mxu0 0
        %859 = vmatprep.subr.bf16.mxu0 0
        %860 = vmatpush1.bf16.msra.mxu0 0
        %861 = vmatprep.subr.bf16.mxu0 0
        %862 = vmatpush1.bf16.msra.mxu0 0
        %863 = vmatprep.subr.bf16.mxu0 0
        %864 = vmatpush1.bf16.msra.mxu0 0
        %865 = vmatprep.subr.bf16.mxu0 0
        %866 = vmatpush1.bf16.msra.mxu0 0
        %867 = vmatprep.mubr.bf16.mxu0 0
        %868 = vmatmul.mubr.bf16.gmra.mrb[0].mxu0 %v833
        %v869 = vpop.f32.mrb[0].mxu0
        %v870 = vadd.f32 %v750, %v869
        %v871 = vpop.f32.mrb[0].mxu0
        %v872 = vpop.f32.mrb[0].mxu0
        %v873 = vpop.f32.mrb[0].mxu0
        %874 = vdwg.mxu0
        %v875 = vadd.f32 %v827, %v870
        %v876 = vxor.u32 %v875, 2147483648
        %v877 = vmul.f32 %v876, 1.442695
        %v878 = vpow.pop %v877
        %v879 = vadd.f32 %v878, 1.0
        %v880 = vrcp.pop %v879
        %v881 = vmul.f32 1.0, %v880
        %883 = vrot.lane.b32.xlu0 %v870, 96
        %v884 = vpop.permute.xlu0 %883
        %v886 = vmul.f32 %v881, %v884
        %888 = vrot.lane.b32.xlu0 %v886, 32
        %v889 = vpop.permute.xlu0 %888
        %v891 = vadd.f32 %v827, %v889
        %v892 = vtanh.pop %v891
        %v893 = vsub.f32 1.0, %v881
        %895 = vrot.lane.b32.xlu0 %v892, 112
        %v896 = vpop.permute.xlu0 %895
        %v898 = vmul.f32 %v893, %v896
        %v899 = vmul.f32 %v881, %v826
        %v900 = vadd.f32 %v898, %v899
        %v901 = vld [vmem:[#allocation2 + $0x4] sm:$0x3]
        %v902 = vpack.c.bf16 %v900, %v900
        %904 = vrot.lane.b32.xlu0 %v902, 112
        %v905 = vpop.permute.xlu0 %904
        %v907 = vsel %vm331, %v905, 0
        %909 = vmatprep.subr.bf16.mxu0 0
        %910 = vmatpush1.bf16.msra.mxu0 %v756
        %911 = vmatprep.subr.bf16.mxu0 0
        %912 = vmatpush1.bf16.msra.mxu0 0
        %913 = vmatprep.subr.bf16.mxu0 0
        %914 = vmatpush1.bf16.msra.mxu0 0
        %915 = vmatprep.subr.bf16.mxu0 0
        %916 = vmatpush1.bf16.msra.mxu0 0
        %917 = vmatprep.subr.bf16.mxu0 0
        %918 = vmatpush1.bf16.msra.mxu0 0
        %919 = vmatprep.subr.bf16.mxu0 0
        %920 = vmatpush1.bf16.msra.mxu0 0
        %921 = vmatprep.subr.bf16.mxu0 0
        %922 = vmatpush1.bf16.msra.mxu0 0
        %923 = vmatprep.subr.bf16.mxu0 0
        %924 = vmatpush1.bf16.msra.mxu0 0
        %925 = vmatprep.subr.bf16.mxu0 0
        %926 = vmatpush1.bf16.msra.mxu0 0
        %927 = vmatprep.subr.bf16.mxu0 0
        %928 = vmatpush1.bf16.msra.mxu0 0
        %929 = vmatprep.subr.bf16.mxu0 0
        %930 = vmatpush1.bf16.msra.mxu0 0
        %931 = vmatprep.subr.bf16.mxu0 0
        %932 = vmatpush1.bf16.msra.mxu0 0
        %933 = vmatprep.subr.bf16.mxu0 0
        %934 = vmatpush1.bf16.msra.mxu0 0
        %935 = vmatprep.subr.bf16.mxu0 0
        %936 = vmatpush1.bf16.msra.mxu0 0
        %937 = vmatprep.subr.bf16.mxu0 0
        %938 = vmatpush1.bf16.msra.mxu0 0
        %939 = vmatprep.subr.bf16.mxu0 0
        %940 = vmatpush1.bf16.msra.mxu0 0
        %941 = vmatprep.mubr.bf16.mxu0 0
        %942 = vmatmul.mubr.bf16.gmra.mrb[0].mxu0 %v907
        %v943 = vpop.f32.mrb[0].mxu0
        %v944 = vadd.f32 %v750, %v943
        %v945 = vpop.f32.mrb[0].mxu0
        %v946 = vpop.f32.mrb[0].mxu0
        %v947 = vpop.f32.mrb[0].mxu0
        %948 = vdwg.mxu0
        %v949 = vadd.f32 %v901, %v944
        %v950 = vxor.u32 %v949, 2147483648
        %v951 = vmul.f32 %v950, 1.442695
        %v952 = vpow.pop %v951
        %v953 = vadd.f32 %v952, 1.0
        %v954 = vrcp.pop %v953
        %v955 = vmul.f32 1.0, %v954
        %957 = vrot.lane.b32.xlu0 %v944, 96
        %v958 = vpop.permute.xlu0 %957
        %v960 = vmul.f32 %v955, %v958
        %962 = vrot.lane.b32.xlu0 %v960, 32
        %v963 = vpop.permute.xlu0 %962
        %v965 = vadd.f32 %v901, %v963
        %v966 = vtanh.pop %v965
        %v967 = vsub.f32 1.0, %v955
        %969 = vrot.lane.b32.xlu0 %v966, 112
        %v970 = vpop.permute.xlu0 %969
        %v972 = vmul.f32 %v967, %v970
        %v973 = vmul.f32 %v955, %v900
        %v974 = vadd.f32 %v972, %v973
        %v975 = vld [vmem:[#allocation2 + $0x6] sm:$0x3]
        %v976 = vpack.c.bf16 %v974, %v974
        %978 = vrot.lane.b32.xlu0 %v976, 112
        %v979 = vpop.permute.xlu0 %978
        %v981 = vsel %vm331, %v979, 0
        %983 = vmatprep.subr.bf16.mxu0 0
        %984 = vmatpush1.bf16.msra.mxu0 %v756
        %985 = vmatprep.subr.bf16.mxu0 0
        %986 = vmatpush1.bf16.msra.mxu0 0
        %987 = vmatprep.subr.bf16.mxu0 0
        %988 = vmatpush1.bf16.msra.mxu0 0
        %989 = vmatprep.subr.bf16.mxu0 0
        %990 = vmatpush1.bf16.msra.mxu0 0
        %991 = vmatprep.subr.bf16.mxu0 0
        %992 = vmatpush1.bf16.msra.mxu0 0
        %993 = vmatprep.subr.bf16.mxu0 0
        %994 = vmatpush1.bf16.msra.mxu0 0
        %995 = vmatprep.subr.bf16.mxu0 0
        %996 = vmatpush1.bf16.msra.mxu0 0
        %997 = vmatprep.subr.bf16.mxu0 0
        %998 = vmatpush1.bf16.msra.mxu0 0
        %999 = vmatprep.subr.bf16.mxu0 0
        %1000 = vmatpush1.bf16.msra.mxu0 0
        %1001 = vmatprep.subr.bf16.mxu0 0
        %1002 = vmatpush1.bf16.msra.mxu0 0
        %1003 = vmatprep.subr.bf16.mxu0 0
        %1004 = vmatpush1.bf16.msra.mxu0 0
        %1005 = vmatprep.subr.bf16.mxu0 0
        %1006 = vmatpush1.bf16.msra.mxu0 0
        %1007 = vmatprep.subr.bf16.mxu0 0
        %1008 = vmatpush1.bf16.msra.mxu0 0
        %1009 = vmatprep.subr.bf16.mxu0 0
        %1010 = vmatpush1.bf16.msra.mxu0 0
        %1011 = vmatprep.subr.bf16.mxu0 0
        %1012 = vmatpush1.bf16.msra.mxu0 0
        %1013 = vmatprep.subr.bf16.mxu0 0
        %1014 = vmatpush1.bf16.msra.mxu0 0
        %1015 = vmatprep.mubr.bf16.mxu0 0
        %1016 = vmatmul.mubr.bf16.gmra.mrb[0].mxu0 %v981
        %v1017 = vpop.f32.mrb[0].mxu0
        %v1018 = vadd.f32 %v750, %v1017
        %v1019 = vpop.f32.mrb[0].mxu0
        %v1020 = vpop.f32.mrb[0].mxu0
        %v1021 = vpop.f32.mrb[0].mxu0
        %1022 = vdwg.mxu0
        %v1023 = vadd.f32 %v975, %v1018
        %v1024 = vxor.u32 %v1023, 2147483648
        %v1025 = vmul.f32 %v1024, 1.442695
        %v1026 = vpow.pop %v1025
        %v1027 = vadd.f32 %v1026, 1.0
        %v1028 = vrcp.pop %v1027
        %v1029 = vmul.f32 1.0, %v1028
        %1031 = vrot.lane.b32.xlu0 %v1018, 96
        %v1032 = vpop.permute.xlu0 %1031
        %v1034 = vmul.f32 %v1029, %v1032
        %1036 = vrot.lane.b32.xlu0 %v1034, 32
        %v1037 = vpop.permute.xlu0 %1036
        %v1039 = vadd.f32 %v975, %v1037
        %v1040 = vtanh.pop %v1039
        %v1041 = vsub.f32 1.0, %v1029
        %1043 = vrot.lane.b32.xlu0 %v1040, 112
        %v1044 = vpop.permute.xlu0 %1043
        %v1046 = vmul.f32 %v1041, %v1044
        %v1047 = vmul.f32 %v1029, %v974
        %v1048 = vadd.f32 %v1046, %v1047
        %v1049 = vld [vmem:[#allocation2 + $0x8] sm:$0x3]
        %v1050 = vpack.c.bf16 %v1048, %v1048
        %1052 = vrot.lane.b32.xlu0 %v1050, 112
        %v1053 = vpop.permute.xlu0 %1052
        %v1055 = vsel %vm331, %v1053, 0
        %1057 = vmatprep.subr.bf16.mxu0 0
        %1058 = vmatpush1.bf16.msra.mxu0 %v756
        %1059 = vmatprep.subr.bf16.mxu0 0
        %1060 = vmatpush1.bf16.msra.mxu0 0
        %1061 = vmatprep.subr.bf16.mxu0 0
        %1062 = vmatpush1.bf16.msra.mxu0 0
        %1063 = vmatprep.subr.bf16.mxu0 0
        %1064 = vmatpush1.bf16.msra.mxu0 0
        %1065 = vmatprep.subr.bf16.mxu0 0
        %1066 = vmatpush1.bf16.msra.mxu0 0
        %1067 = vmatprep.subr.bf16.mxu0 0
        %1068 = vmatpush1.bf16.msra.mxu0 0
        %1069 = vmatprep.subr.bf16.mxu0 0
        %1070 = vmatpush1.bf16.msra.mxu0 0
        %1071 = vmatprep.subr.bf16.mxu0 0
        %1072 = vmatpush1.bf16.msra.mxu0 0
        %1073 = vmatprep.subr.bf16.mxu0 0
        %1074 = vmatpush1.bf16.msra.mxu0 0
        %1075 = vmatprep.subr.bf16.mxu0 0
        %1076 = vmatpush1.bf16.msra.mxu0 0
        %1077 = vmatprep.subr.bf16.mxu0 0
        %1078 = vmatpush1.bf16.msra.mxu0 0
        %1079 = vmatprep.subr.bf16.mxu0 0
        %1080 = vmatpush1.bf16.msra.mxu0 0
        %1081 = vmatprep.subr.bf16.mxu0 0
        %1082 = vmatpush1.bf16.msra.mxu0 0
        %1083 = vmatprep.subr.bf16.mxu0 0
        %1084 = vmatpush1.bf16.msra.mxu0 0
        %1085 = vmatprep.subr.bf16.mxu0 0
        %1086 = vmatpush1.bf16.msra.mxu0 0
        %1087 = vmatprep.subr.bf16.mxu0 0
        %1088 = vmatpush1.bf16.msra.mxu0 0
        %1089 = vmatprep.mubr.bf16.mxu0 0
        %1090 = vmatmul.mubr.bf16.gmra.mrb[0].mxu0 %v1055
        %v1091 = vpop.f32.mrb[0].mxu0
        %v1092 = vadd.f32 %v750, %v1091
        %v1093 = vpop.f32.mrb[0].mxu0
        %v1094 = vpop.f32.mrb[0].mxu0
        %v1095 = vpop.f32.mrb[0].mxu0
        %1096 = vdwg.mxu0
        %v1097 = vadd.f32 %v1049, %v1092
        %v1098 = vxor.u32 %v1097, 2147483648
        %v1099 = vmul.f32 %v1098, 1.442695
        %v1100 = vpow.pop %v1099
        %v1101 = vadd.f32 %v1100, 1.0
        %v1102 = vrcp.pop %v1101
        %v1103 = vmul.f32 1.0, %v1102
        %1105 = vrot.lane.b32.xlu0 %v1092, 96
        %v1106 = vpop.permute.xlu0 %1105
        %v1108 = vmul.f32 %v1103, %v1106
        %1110 = vrot.lane.b32.xlu0 %v1108, 32
        %v1111 = vpop.permute.xlu0 %1110
        %v1113 = vadd.f32 %v1049, %v1111
        %v1114 = vtanh.pop %v1113
        %v1115 = vsub.f32 1.0, %v1103
        %1117 = vrot.lane.b32.xlu0 %v1114, 112
        %v1118 = vpop.permute.xlu0 %1117
        %v1120 = vmul.f32 %v1115, %v1118
        %v1121 = vmul.f32 %v1103, %v1048
        %v1122 = vadd.f32 %v1120, %v1121
        %v1123 = vld [vmem:[#allocation2 + $0xa] sm:$0x3]
        %v1124 = vpack.c.bf16 %v1122, %v1122
        %1126 = vrot.lane.b32.xlu0 %v1124, 112
        %v1127 = vpop.permute.xlu0 %1126
        %v1129 = vsel %vm331, %v1127, 0
        %1131 = vmatprep.subr.bf16.mxu0 0
        %1132 = vmatpush1.bf16.msra.mxu0 %v756
        %1133 = vmatprep.subr.bf16.mxu0 0
        %1134 = vmatpush1.bf16.msra.mxu0 0
        %1135 = vmatprep.subr.bf16.mxu0 0
        %1136 = vmatpush1.bf16.msra.mxu0 0
        %1137 = vmatprep.subr.bf16.mxu0 0
        %1138 = vmatpush1.bf16.msra.mxu0 0
        %1139 = vmatprep.subr.bf16.mxu0 0
        %1140 = vmatpush1.bf16.msra.mxu0 0
        %1141 = vmatprep.subr.bf16.mxu0 0
        %1142 = vmatpush1.bf16.msra.mxu0 0
        %1143 = vmatprep.subr.bf16.mxu0 0
        %1144 = vmatpush1.bf16.msra.mxu0 0
        %1145 = vmatprep.subr.bf16.mxu0 0
        %1146 = vmatpush1.bf16.msra.mxu0 0
        %1147 = vmatprep.subr.bf16.mxu0 0
        %1148 = vmatpush1.bf16.msra.mxu0 0
        %1149 = vmatprep.subr.bf16.mxu0 0
        %1150 = vmatpush1.bf16.msra.mxu0 0
        %1151 = vmatprep.subr.bf16.mxu0 0
        %1152 = vmatpush1.bf16.msra.mxu0 0
        %1153 = vmatprep.subr.bf16.mxu0 0
        %1154 = vmatpush1.bf16.msra.mxu0 0
        %1155 = vmatprep.subr.bf16.mxu0 0
        %1156 = vmatpush1.bf16.msra.mxu0 0
        %1157 = vmatprep.subr.bf16.mxu0 0
        %1158 = vmatpush1.bf16.msra.mxu0 0
        %1159 = vmatprep.subr.bf16.mxu0 0
        %1160 = vmatpush1.bf16.msra.mxu0 0
        %1161 = vmatprep.subr.bf16.mxu0 0
        %1162 = vmatpush1.bf16.msra.mxu0 0
        %1163 = vmatprep.mubr.bf16.mxu0 0
        %1164 = vmatmul.mubr.bf16.gmra.mrb[0].mxu0 %v1129
        %v1165 = vpop.f32.mrb[0].mxu0
        %v1166 = vadd.f32 %v750, %v1165
        %v1167 = vpop.f32.mrb[0].mxu0
        %v1168 = vpop.f32.mrb[0].mxu0
        %v1169 = vpop.f32.mrb[0].mxu0
        %1170 = vdwg.mxu0
        %v1171 = vadd.f32 %v1123, %v1166
        %v1172 = vxor.u32 %v1171, 2147483648
        %v1173 = vmul.f32 %v1172, 1.442695
        %v1174 = vpow.pop %v1173
        %v1175 = vadd.f32 %v1174, 1.0
        %v1176 = vrcp.pop %v1175
        %v1177 = vmul.f32 1.0, %v1176
        %1179 = vrot.lane.b32.xlu0 %v1166, 96
        %v1180 = vpop.permute.xlu0 %1179
        %v1182 = vmul.f32 %v1177, %v1180
        %1184 = vrot.lane.b32.xlu0 %v1182, 32
        %v1185 = vpop.permute.xlu0 %1184
        %v1187 = vadd.f32 %v1123, %v1185
        %v1188 = vtanh.pop %v1187
        %v1189 = vsub.f32 1.0, %v1177
        %1191 = vrot.lane.b32.xlu0 %v1188, 112
        %v1192 = vpop.permute.xlu0 %1191
        %v1194 = vmul.f32 %v1189, %v1192
        %v1195 = vmul.f32 %v1177, %v1122
        %v1196 = vadd.f32 %v1194, %v1195
        %v1197 = vld [vmem:[#allocation2 + $0xc] sm:$0x3]
        %v1198 = vpack.c.bf16 %v1196, %v1196
        %1200 = vrot.lane.b32.xlu0 %v1198, 112
        %v1201 = vpop.permute.xlu0 %1200
        %v1203 = vsel %vm331, %v1201, 0
        %1205 = vmatprep.subr.bf16.mxu0 0
        %1206 = vmatpush1.bf16.msra.mxu0 %v756
        %1207 = vmatprep.subr.bf16.mxu0 0
        %1208 = vmatpush1.bf16.msra.mxu0 0
        %1209 = vmatprep.subr.bf16.mxu0 0
        %1210 = vmatpush1.bf16.msra.mxu0 0
        %1211 = vmatprep.subr.bf16.mxu0 0
        %1212 = vmatpush1.bf16.msra.mxu0 0
        %1213 = vmatprep.subr.bf16.mxu0 0
        %1214 = vmatpush1.bf16.msra.mxu0 0
        %1215 = vmatprep.subr.bf16.mxu0 0
        %1216 = vmatpush1.bf16.msra.mxu0 0
        %1217 = vmatprep.subr.bf16.mxu0 0
        %1218 = vmatpush1.bf16.msra.mxu0 0
        %1219 = vmatprep.subr.bf16.mxu0 0
        %1220 = vmatpush1.bf16.msra.mxu0 0
        %1221 = vmatprep.subr.bf16.mxu0 0
        %1222 = vmatpush1.bf16.msra.mxu0 0
        %1223 = vmatprep.subr.bf16.mxu0 0
        %1224 = vmatpush1.bf16.msra.mxu0 0
        %1225 = vmatprep.subr.bf16.mxu0 0
        %1226 = vmatpush1.bf16.msra.mxu0 0
        %1227 = vmatprep.subr.bf16.mxu0 0
        %1228 = vmatpush1.bf16.msra.mxu0 0
        %1229 = vmatprep.subr.bf16.mxu0 0
        %1230 = vmatpush1.bf16.msra.mxu0 0
        %1231 = vmatprep.subr.bf16.mxu0 0
        %1232 = vmatpush1.bf16.msra.mxu0 0
        %1233 = vmatprep.subr.bf16.mxu0 0
        %1234 = vmatpush1.bf16.msra.mxu0 0
        %1235 = vmatprep.subr.bf16.mxu0 0
        %1236 = vmatpush1.bf16.msra.mxu0 0
        %1237 = vmatprep.mubr.bf16.mxu0 0
        %1238 = vmatmul.mubr.bf16.gmra.mrb[0].mxu0 %v1203
        %v1239 = vpop.f32.mrb[0].mxu0
        %v1240 = vadd.f32 %v750, %v1239
        %v1241 = vpop.f32.mrb[0].mxu0
        %v1242 = vpop.f32.mrb[0].mxu0
        %v1243 = vpop.f32.mrb[0].mxu0
        %1244 = vdwg.mxu0
        %v1245 = vadd.f32 %v1197, %v1240
        %v1246 = vxor.u32 %v1245, 2147483648
        %v1247 = vmul.f32 %v1246, 1.442695
        %v1248 = vpow.pop %v1247
        %v1249 = vadd.f32 %v1248, 1.0
        %v1250 = vrcp.pop %v1249
        %v1251 = vmul.f32 1.0, %v1250
        %1253 = vrot.lane.b32.xlu0 %v1240, 96
        %v1254 = vpop.permute.xlu0 %1253
        %v1256 = vmul.f32 %v1251, %v1254
        %1258 = vrot.lane.b32.xlu0 %v1256, 32
        %v1259 = vpop.permute.xlu0 %1258
        %v1261 = vadd.f32 %v1197, %v1259
        %v1262 = vtanh.pop %v1261
        %v1263 = vsub.f32 1.0, %v1251
        %1265 = vrot.lane.b32.xlu0 %v1262, 112
        %v1266 = vpop.permute.xlu0 %1265
        %v1268 = vmul.f32 %v1263, %v1266
        %v1269 = vmul.f32 %v1251, %v1196
        %v1270 = vadd.f32 %v1268, %v1269
        %v1271 = vld [vmem:[#allocation2 + $0xe] sm:$0x3]
        %v1272 = vpack.c.bf16 %v1270, %v1270
        %1274 = vrot.lane.b32.xlu0 %v1272, 112
        %v1275 = vpop.permute.xlu0 %1274
        %v1277 = vsel %vm331, %v1275, 0
        %1279 = vmatprep.subr.bf16.mxu0 0
        %1280 = vmatpush1.bf16.msra.mxu0 %v756
        %1281 = vmatprep.subr.bf16.mxu0 0
        %1282 = vmatpush1.bf16.msra.mxu0 0
        %1283 = vmatprep.subr.bf16.mxu0 0
        %1284 = vmatpush1.bf16.msra.mxu0 0
        %1285 = vmatprep.subr.bf16.mxu0 0
        %1286 = vmatpush1.bf16.msra.mxu0 0
        %1287 = vmatprep.subr.bf16.mxu0 0
        %1288 = vmatpush1.bf16.msra.mxu0 0
        %1289 = vmatprep.subr.bf16.mxu0 0
        %1290 = vmatpush1.bf16.msra.mxu0 0
        %1291 = vmatprep.subr.bf16.mxu0 0
        %1292 = vmatpush1.bf16.msra.mxu0 0
        %1293 = vmatprep.subr.bf16.mxu0 0
        %1294 = vmatpush1.bf16.msra.mxu0 0
        %1295 = vmatprep.subr.bf16.mxu0 0
        %1296 = vmatpush1.bf16.msra.mxu0 0
        %1297 = vmatprep.subr.bf16.mxu0 0
        %1298 = vmatpush1.bf16.msra.mxu0 0
        %1299 = vmatprep.subr.bf16.mxu0 0
        %1300 = vmatpush1.bf16.msra.mxu0 0
        %1301 = vmatprep.subr.bf16.mxu0 0
        %1302 = vmatpush1.bf16.msra.mxu0 0
        %1303 = vmatprep.subr.bf16.mxu0 0
        %1304 = vmatpush1.bf16.msra.mxu0 0
        %1305 = vmatprep.subr.bf16.mxu0 0
        %1306 = vmatpush1.bf16.msra.mxu0 0
        %1307 = vmatprep.subr.bf16.mxu0 0
        %1308 = vmatpush1.bf16.msra.mxu0 0
        %1309 = vmatprep.subr.bf16.mxu0 0
        %1310 = vmatpush1.bf16.msra.mxu0 0
        %1311 = vmatprep.mubr.bf16.mxu0 0
        %1312 = vmatmul.mubr.bf16.gmra.mrb[0].mxu0 %v1277
        %v1313 = vpop.f32.mrb[0].mxu0
        %v1314 = vadd.f32 %v750, %v1313
        %v1315 = vpop.f32.mrb[0].mxu0
        %v1316 = vpop.f32.mrb[0].mxu0
        %v1317 = vpop.f32.mrb[0].mxu0
        %1318 = vdwg.mxu0
        %v1319 = vadd.f32 %v1271, %v1314
        %v1320 = vxor.u32 %v1319, 2147483648
        %v1321 = vmul.f32 %v1320, 1.442695
        %v1322 = vpow.pop %v1321
        %v1323 = vadd.f32 %v1322, 1.0
        %v1324 = vrcp.pop %v1323
        %v1325 = vmul.f32 1.0, %v1324
        %1327 = vrot.lane.b32.xlu0 %v1314, 96
        %v1328 = vpop.permute.xlu0 %1327
        %v1330 = vmul.f32 %v1325, %v1328
        %1332 = vrot.lane.b32.xlu0 %v1330, 32
        %v1333 = vpop.permute.xlu0 %1332
        %v1335 = vadd.f32 %v1271, %v1333
        %v1336 = vtanh.pop %v1335
        %v1337 = vsub.f32 1.0, %v1325
        %1339 = vrot.lane.b32.xlu0 %v1336, 112
        %v1340 = vpop.permute.xlu0 %1339
        %v1342 = vmul.f32 %v1337, %v1340
        %v1343 = vmul.f32 %v1325, %v1270
        %v1344 = vadd.f32 %v1342, %v1343
        %v1345 = vld [vmem:[#allocation2 + $0x10] sm:$0x3]
        %v1346 = vpack.c.bf16 %v1344, %v1344
        %1348 = vrot.lane.b32.xlu0 %v1346, 112
        %v1349 = vpop.permute.xlu0 %1348
        %v1351 = vsel %vm331, %v1349, 0
        %1353 = vmatprep.subr.bf16.mxu0 0
        %1354 = vmatpush1.bf16.msra.mxu0 %v756
        %1355 = vmatprep.subr.bf16.mxu0 0
        %1356 = vmatpush1.bf16.msra.mxu0 0
        %1357 = vmatprep.subr.bf16.mxu0 0
        %1358 = vmatpush1.bf16.msra.mxu0 0
        %1359 = vmatprep.subr.bf16.mxu0 0
        %1360 = vmatpush1.bf16.msra.mxu0 0
        %1361 = vmatprep.subr.bf16.mxu0 0
        %1362 = vmatpush1.bf16.msra.mxu0 0
        %1363 = vmatprep.subr.bf16.mxu0 0
        %1364 = vmatpush1.bf16.msra.mxu0 0
        %1365 = vmatprep.subr.bf16.mxu0 0
        %1366 = vmatpush1.bf16.msra.mxu0 0
        %1367 = vmatprep.subr.bf16.mxu0 0
        %1368 = vmatpush1.bf16.msra.mxu0 0
        %1369 = vmatprep.subr.bf16.mxu0 0
        %1370 = vmatpush1.bf16.msra.mxu0 0
        %1371 = vmatprep.subr.bf16.mxu0 0
        %1372 = vmatpush1.bf16.msra.mxu0 0
        %1373 = vmatprep.subr.bf16.mxu0 0
        %1374 = vmatpush1.bf16.msra.mxu0 0
        %1375 = vmatprep.subr.bf16.mxu0 0
        %1376 = vmatpush1.bf16.msra.mxu0 0
        %1377 = vmatprep.subr.bf16.mxu0 0
        %1378 = vmatpush1.bf16.msra.mxu0 0
        %1379 = vmatprep.subr.bf16.mxu0 0
        %1380 = vmatpush1.bf16.msra.mxu0 0
        %1381 = vmatprep.subr.bf16.mxu0 0
        %1382 = vmatpush1.bf16.msra.mxu0 0
        %1383 = vmatprep.subr.bf16.mxu0 0
        %1384 = vmatpush1.bf16.msra.mxu0 0
        %1385 = vmatprep.mubr.bf16.mxu0 0
        %1386 = vmatmul.mubr.bf16.gmra.mrb[0].mxu0 %v1351
        %v1387 = vpop.f32.mrb[0].mxu0
        %v1388 = vadd.f32 %v750, %v1387
        %v1389 = vpop.f32.mrb[0].mxu0
        %v1390 = vpop.f32.mrb[0].mxu0
        %v1391 = vpop.f32.mrb[0].mxu0
        %1392 = vdwg.mxu0
        %v1393 = vadd.f32 %v1345, %v1388
        %v1394 = vxor.u32 %v1393, 2147483648
        %v1395 = vmul.f32 %v1394, 1.442695
        %v1396 = vpow.pop %v1395
        %v1397 = vadd.f32 %v1396, 1.0
        %v1398 = vrcp.pop %v1397
        %v1399 = vmul.f32 1.0, %v1398
        %1401 = vrot.lane.b32.xlu0 %v1388, 96
        %v1402 = vpop.permute.xlu0 %1401
        %v1404 = vmul.f32 %v1399, %v1402
        %1406 = vrot.lane.b32.xlu0 %v1404, 32
        %v1407 = vpop.permute.xlu0 %1406
        %v1409 = vadd.f32 %v1345, %v1407
        %v1410 = vtanh.pop %v1409
        %v1411 = vsub.f32 1.0, %v1399
        %1413 = vrot.lane.b32.xlu0 %v1410, 112
        %v1414 = vpop.permute.xlu0 %1413
        %v1416 = vmul.f32 %v1411, %v1414
        %v1417 = vmul.f32 %v1399, %v1344
        %v1418 = vadd.f32 %v1416, %v1417
        %v1419 = vld [vmem:[#allocation2 + $0x12] sm:$0x3]
        %v1420 = vpack.c.bf16 %v1418, %v1418
        %1422 = vrot.lane.b32.xlu0 %v1420, 112
        %v1423 = vpop.permute.xlu0 %1422
        %v1425 = vsel %vm331, %v1423, 0
        %1427 = vmatprep.subr.bf16.mxu0 0
        %1428 = vmatpush1.bf16.msra.mxu0 %v756
        %1429 = vmatprep.subr.bf16.mxu0 0
        %1430 = vmatpush1.bf16.msra.mxu0 0
        %1431 = vmatprep.subr.bf16.mxu0 0
        %1432 = vmatpush1.bf16.msra.mxu0 0
        %1433 = vmatprep.subr.bf16.mxu0 0
        %1434 = vmatpush1.bf16.msra.mxu0 0
        %1435 = vmatprep.subr.bf16.mxu0 0
        %1436 = vmatpush1.bf16.msra.mxu0 0
        %1437 = vmatprep.subr.bf16.mxu0 0
        %1438 = vmatpush1.bf16.msra.mxu0 0
        %1439 = vmatprep.subr.bf16.mxu0 0
        %1440 = vmatpush1.bf16.msra.mxu0 0
        %1441 = vmatprep.subr.bf16.mxu0 0
        %1442 = vmatpush1.bf16.msra.mxu0 0
        %1443 = vmatprep.subr.bf16.mxu0 0
        %1444 = vmatpush1.bf16.msra.mxu0 0
        %1445 = vmatprep.subr.bf16.mxu0 0
        %1446 = vmatpush1.bf16.msra.mxu0 0
        %1447 = vmatprep.subr.bf16.mxu0 0
        %1448 = vmatpush1.bf16.msra.mxu0 0
        %1449 = vmatprep.subr.bf16.mxu0 0
        %1450 = vmatpush1.bf16.msra.mxu0 0
        %1451 = vmatprep.subr.bf16.mxu0 0
        %1452 = vmatpush1.bf16.msra.mxu0 0
        %1453 = vmatprep.subr.bf16.mxu0 0
        %1454 = vmatpush1.bf16.msra.mxu0 0
        %1455 = vmatprep.subr.bf16.mxu0 0
        %1456 = vmatpush1.bf16.msra.mxu0 0
        %1457 = vmatprep.subr.bf16.mxu0 0
        %1458 = vmatpush1.bf16.msra.mxu0 0
        %1459 = vmatprep.mubr.bf16.mxu0 0
        %1460 = vmatmul.mubr.bf16.gmra.mrb[0].mxu0 %v1425
        %v1461 = vpop.f32.mrb[0].mxu0
        %v1462 = vadd.f32 %v750, %v1461
        %v1463 = vpop.f32.mrb[0].mxu0
        %v1464 = vpop.f32.mrb[0].mxu0
        %v1465 = vpop.f32.mrb[0].mxu0
        %1466 = vdwg.mxu0
        %v1467 = vadd.f32 %v1419, %v1462
        %v1468 = vxor.u32 %v1467, 2147483648
        %v1469 = vmul.f32 %v1468, 1.442695
        %v1470 = vpow.pop %v1469
        %v1471 = vadd.f32 %v1470, 1.0
        %v1472 = vrcp.pop %v1471
        %v1473 = vmul.f32 1.0, %v1472
        %1475 = vrot.lane.b32.xlu0 %v1462, 96
        %v1476 = vpop.permute.xlu0 %1475
        %v1478 = vmul.f32 %v1473, %v1476
        %1480 = vrot.lane.b32.xlu0 %v1478, 32
        %v1481 = vpop.permute.xlu0 %1480
        %v1483 = vadd.f32 %v1419, %v1481
        %v1484 = vtanh.pop %v1483
        %v1485 = vsub.f32 1.0, %v1473
        %1487 = vrot.lane.b32.xlu0 %v1484, 112
        %v1488 = vpop.permute.xlu0 %1487
        %v1490 = vmul.f32 %v1485, %v1488
        %v1491 = vmul.f32 %v1473, %v1418
        %v1492 = vadd.f32 %v1490, %v1491
        %vm1493 = vcmask 255104
        %1494 = vst.msk [vmem:[%s298] sm:$0x3] %vm1493, %v1492
        %s1495 = sand.u32 %s203, 1
        %s1496 = scalar_lea.sflag [#allocation4], %s1495
        %s1497 = sand.u32 %s203, 1
        %s1498 = smul.addr %s1497, 2
        %s1499 = scalar_lea.vmem [#allocation3], %s1498
        // Predicated region
        $region53: #{tpu_custom_call.1} parent=51 // pred_check
          %p1500 = pneg %p213
        $region54: #{tpu_custom_call.1} parent=51 // pred_check_branch
          %1502 = sbr.rel (%p1500) target = $region56
        $region55: #{tpu_custom_call.1} parent=51 // pred_region
          %s1504 = ssub.s32 32, 32
          %1505 = vsyncadd %s1496, %s1504
          %s1506 = smul.addr %s22, 32
          %s1507 = scalar_lea.hbm %s8, %s1506
          %s1509 = sshll.u32 %s1499, 4
          %s1510 = int_to_ptr.vmem [resolvable:$true] %s1509
          %1512 = dma.vmem_to_hbm [thread:$0]  %s1510, 32, %s1507, %s1496
        $region56: #{tpu_custom_call.1} parent=51 // pred_fallthru
          _
      $region52: #{tpu_custom_call.1} parent=5 // pred_fallthru
        _
      %p1513 = scmp.le.s32.totalorder 2, %s17
      // Predicated region
      $region57: #{tpu_custom_call.1} parent=5 // pred_check
        %p1514 = pneg %p1513
      $region58: #{tpu_custom_call.1} parent=5 // pred_check_branch
        %1516 = sbr.rel (%p1514) target = $region60
      $region59: #{tpu_custom_call.1} parent=5 // pred_region
        %s1517 = ssub.s32 %s17, 2
        // Predicated region
        $region61: #{tpu_custom_call.1} parent=59 // pred_check
          %p1518 = pneg %p219
        $region62: #{tpu_custom_call.1} parent=59 // pred_check_branch
          %1520 = sbr.rel (%p1518) target = $region64
        $region63: #{tpu_custom_call.1} parent=59 // pred_region
          %s1521 = sand.u32 %s204, 1
          %s1522 = scalar_lea.sflag [#allocation4], %s1521
          %s1523 = sand.u32 %s204, 1
          %s1524 = smul.addr %s1523, 2
          %s1525 = scalar_lea.vmem [#allocation3], %s1524
          %1526 = dma.done %s1522, 32
        $region64: #{tpu_custom_call.1} parent=59 // pred_fallthru
          _
      $region60: #{tpu_custom_call.1} parent=5 // pred_fallthru
        _
    $region6: #{tpu_custom_call.1} parent=1 // loop_footer
      %s21 = sadd.s32 1, %s17
    $region7: #{tpu_custom_call.1} parent=1 // loop_footer_branch
      %16 = sbr.rel target = $region3
    $region8: #{tpu_custom_call.1} parent=1 // loop_exit
      _
    %1527 = vsyncpa [#allocation4], 1
    %s1528 = scalar_lea.sflag [#allocation4], 1
    %1529 = vsyncpa %s1528, 1

</llo_original>
